<compile_context>
chip_gen: v6e
topology: v6e:2x2x1
jax: 0.10.0
libtpu: 0.0.40
codegen_flags: <defaults>
</compile_context>

<pallas_src>
import functools

import jax
import jax.numpy as jnp
import numpy as np
from jax.experimental import pallas as pl
from jax.experimental.pallas import tpu as pltpu


# ----------------------------------------------------------------------------
# Hardware-aware knobs
# ----------------------------------------------------------------------------
def _round_up(x, m):
    return (x + m - 1) // m * m


def _device_kind():
    try:
        return jax.devices()[0].device_kind.lower()
    except Exception:
        return ""


def _vmem_phys_bytes():
    try:
        return int(pltpu.get_tpu_info().vmem_capacity_bytes)
    except Exception:
        pass
    if "7" in _device_kind():            # v7x-class: 64 MiB VMEM per TensorCore
        return 64 * 1024 * 1024
    return 128 * 1024 * 1024


def _budgets():
    """(conv tile budget, scoped vmem limit, avgpool block budget) in bytes."""
    if _vmem_phys_bytes() <= 64 * 1024 * 1024:            # v7x-class
        return 36 * 2 ** 20, 44 * 2 ** 20, 2 * 2 ** 20
    return 80 * 2 ** 20, 100 * 2 ** 20, 6 * 2 ** 20        # v5e / v6e-class


def _is_v5():
    return "v5" in _device_kind()


# ----------------------------------------------------------------------------
# Pallas kernels
# ----------------------------------------------------------------------------
def _conv_kernel(x_ref, w_ref, b_ref, o_ref, acc_ref, *, c, wq, tlen):
    """3x3 stride-2 conv on a space-to-depth (4C-channel) slab row-block.

    x_ref:   (L, 4C)     slab tile, L = (th+1)*wq + 8, flattened (slab_row, col)
                         with z[r, col, (2a+b)*C + ci] = xpad[2r+a, 2col+b, ci].
    w_ref:   (9C, tn)    tap-stacked weights (row order matches `dots` below).
    b_ref:   (1, tn)     f32 bias.
    o_ref:   (tlen, tn)  tlen = th*wq output positions (junk cols cropped later).
    acc_ref: (tlen, tn)  f32 accumulator scratch (MRB-friendly on v7x).
    """
    # (row_offset, channel_offset, contraction depth K, weight row offset)
    dots = (
        (0,      0,     4 * c, 0 * c),   # taps (0,0),(0,1),(1,0),(1,1)  K=4C
        (wq,     0,     2 * c, 4 * c),   # taps (2,0),(2,1)              K=2C
        (1,      0,     1 * c, 6 * c),   # tap  (0,2)                    K=C
        (1,      2 * c, 1 * c, 7 * c),   # tap  (1,2)                    K=C
        (wq + 1, 0,     1 * c, 8 * c),   # tap  (2,2)                    K=C
    )
    for i, (roff, coff, k, woff) in enumerate(dots):
        d = jnp.dot(x_ref[roff:roff + tlen, coff:coff + k],
                    w_ref[woff:woff + k, :],
                    preferred_element_type=jnp.float32)
        if i == 0:
            acc_ref[...] = d
        else:
            acc_ref[...] += d
    o_ref[...] = (acc_ref[...] + b_ref[...]).astype(o_ref.dtype)


def _avgpool_kernel(x_ref, p_ref, o_ref):
    """2x2/2 average pool of G folded output rows as one lane-dense MXU dot."""
    # TODO(synk): pass precision=HIGHEST here if bit-exact f32 pooling is
    # required; the default MXU f32 path may round operands to bf16.
    o_ref[...] = jnp.dot(x_ref[...], p_ref[...],
                         preferred_element_type=jnp.float32).astype(o_ref.dtype)


# ----------------------------------------------------------------------------
# Wrappers (layout glue only: pad, space-to-depth, row blocking)
# ----------------------------------------------------------------------------
@functools.partial(jax.jit, static_argnames=("mxu_dtype",))
def downsample2d_with_conv(x_nchw, weight, bias, mxu_dtype=None):
    """F.pad(x, (0,1,0,1)) then Conv2d(kernel_size=3, stride=2, padding=0)."""
    N, C, H, W = x_nchw.shape
    Cout = weight.shape[0]
    out_dtype = x_nchw.dtype
    cdt = jnp.dtype(out_dtype if mxu_dtype is None else mxu_dtype)
    item_c = cdt.itemsize
    item_o = jnp.dtype(out_dtype).itemsize

    Ho = (H + 1 - 3) // 2 + 1
    Wo = (W + 1 - 3) // 2 + 1
    C4 = 4 * C
    Wq = _round_up(Wo + 1, 8)                    # sublane-aligned slab width
    Cout_pad = _round_up(Cout, 128)              # lane-dense output stores

    budget, vmem_limit, _ = _budgets()

    # ---- Cout tiling: keep the whole weight VMEM-resident when it is small.
    tn_pref = 128 if _is_v5() else 256
    if Cout_pad <= tn_pref or 9 * C * Cout_pad * item_c <= 6 * 2 ** 20:
        tn = Cout_pad
    else:
        tn = tn_pref if Cout_pad % tn_pref == 0 else 128
    if 2 * 9 * C * tn * item_c > budget // 2:    # weight tile alone too fat
        tn = 128
    J = Cout_pad // tn

    # ---- output-row-block tiling (1 halo slab row per block).
    def footprint(th_):
        l_ = (th_ + 1) * Wq + 8
        return (2 * l_ * C4 * item_c            # x block (double buffered)
                + 2 * 9 * C * tn * item_c       # weight tile
                + 2 * th_ * Wq * tn * item_o    # output tile
                + th_ * Wq * tn * 4             # f32 accumulator scratch
                + 2 * tn * 4)                   # bias

    th = max(1, min(Ho, (2 * 2 ** 20) // max(1, Wq * tn * 4)))  # ~2 MiB acc
    th = max(th, min(Ho, pl.cdiv(512, Wq)))                     # decent MXU rows
    while th > 1 and footprint(th) > budget:
        th -= 1
    if N * J == 1 and Ho >= 2:                   # give both v7x cores work
        th = min(th, pl.cdiv(Ho, 2))
    nB = pl.cdiv(Ho, th)
    tlen = th * Wq
    L = (th + 1) * Wq + 8

    # ---- space-to-depth repack (single pass over the activations).
    x = jnp.transpose(x_nchw, (0, 2, 3, 1)).astype(cdt)         # NHWC
    Hb, Wb = 2 * (Ho + 1), 2 * (Wo + 1)
    x = jnp.pad(x, ((0, 0), (0, Hb - H), (0, Wb - W), (0, 0)))
    z = x.reshape(N, Ho + 1, 2, Wo + 1, 2, C)
    z = jnp.transpose(z, (0, 1, 3, 2, 4, 5)).reshape(N, Ho + 1, Wo + 1, C4)
    z = jnp.pad(z, ((0, 0), (0, 0), (0, Wq - (Wo + 1)), (0, 0)))

    # Row blocks with a 1-slab-row halo (last block clamps to the last row).
    ridx = np.minimum(np.arange(nB)[:, None] * th
                      + np.arange(th + 1)[None, :], Ho).reshape(-1)
    zb = jnp.take(z, jnp.asarray(ridx, jnp.int32), axis=1)
    zb = zb.reshape(N, nB, (th + 1) * Wq, C4)
    zb = jnp.pad(zb, ((0, 0), (0, 0), (0, L - (th + 1) * Wq), (0, 0)))

    # ---- weights: stack the 9 taps along K in the order the kernel consumes.
    order = [(0, 0), (0, 1), (1, 0), (1, 1), (2, 0), (2, 1), (0, 2), (1, 2), (2, 2)]
    wf = jnp.concatenate([weight[:, :, kh, kw].T for kh, kw in order], axis=0)
    wf = jnp.pad(wf, ((0, 0), (0, Cout_pad - Cout))).astype(cdt)  # (9C, Cout_pad)
    bf = jnp.pad(bias.astype(jnp.float32), (0, Cout_pad - Cout)).reshape(1, Cout_pad)

    cost = pl.CostEstimate(
        flops=2 * N * nB * tlen * 9 * C * Cout_pad,
        transcendentals=0,
        bytes_accessed=(zb.size * J + wf.size) * item_c + bf.size * 4
        + N * nB * tlen * Cout_pad * item_o,
    )

    out = pl.pallas_call(
        functools.partial(_conv_kernel, c=C, wq=Wq, tlen=tlen),
        out_shape=jax.ShapeDtypeStruct((N, nB, tlen, Cout_pad), out_dtype),
        grid=(J, N, nB),                 # j slowest -> weight tile stays resident
        in_specs=[
            pl.BlockSpec((None, None, L, C4), lambda j, n, b: (n, b, 0, 0)),
            pl.BlockSpec((9 * C, tn), lambda j, n, b: (0, j)),
            pl.BlockSpec((1, tn), lambda j, n, b: (0, j)),
        ],
        out_specs=pl.BlockSpec((None, None, tlen, tn),
                               lambda j, n, b: (n, b, 0, j)),
        scratch_shapes=[pltpu.VMEM((tlen, tn), jnp.float32)],
        compiler_params=pltpu.CompilerParams(
            dimension_semantics=("parallel", "parallel", "parallel"),
            vmem_limit_bytes=vmem_limit,
        ),
        cost_estimate=cost,
    )(zb, wf, bf)

    out = out.reshape(N, nB * th, Wq, Cout_pad)[:, :Ho, :Wo, :Cout]
    return jnp.transpose(out, (0, 3, 1, 2))                     # back to NCHW


@jax.jit
def downsample2d_avgpool(x_nchw):
    """AvgPool2d(kernel_size=2, stride=2), NCHW-native (no layout transposes)."""
    N, C, H, W = x_nchw.shape
    Ho, Wo = H // 2, W // 2
    dtype = x_nchw.dtype
    item = jnp.dtype(dtype).itemsize

    xs = x_nchw[:, :, :2 * Ho, :2 * Wo]          # drop odd tail (ceil_mode=False)

    # Fold G whole output rows into the lane dimension so loads/stores stay
    # lane-dense even when Wo < 128 (pure metadata reshape: rows are contiguous).
    divisors = [g for g in range(1, Ho + 1) if Ho % g == 0]
    G = next((g for g in divisors if g * Wo >= 128), divisors[-1])
    M = N * C * (Ho // G)
    KL = 4 * G * Wo                              # input lanes per block row
    OL = G * Wo                                  # output lanes per block row
    x2 = xs.reshape(M, KL)

    # Block-diagonal pooling matrix (0.25 folded in); stays VMEM-resident.
    wi = np.arange(KL)
    col = wi % (4 * Wo) % (2 * Wo)
    j = (wi // (4 * Wo)) * Wo + col // 2
    P = np.zeros((KL, OL), np.float32)
    P[wi, j] = 0.25
    P = jnp.asarray(P, dtype=dtype)

    _, vmem_limit, blk_budget = _budgets()
    tm = max(8, (blk_budget // max(1, KL * item)) // 8 * 8)
    tm = min(tm, M)
    if tm < M and M % tm:                        # prefer an even grid split
        for cand in range(tm, 7, -8):
            if M % cand == 0:
                tm = cand
                break

    cost = pl.CostEstimate(
        flops=2 * M * KL * OL,
        transcendentals=0,
        bytes_accessed=(M * KL + KL * OL + M * OL) * item,
    )

    out = pl.pallas_call(
        _avgpool_kernel,
        out_shape=jax.ShapeDtypeStruct((M, OL), dtype),
        grid=(pl.cdiv(M, tm),),
        in_specs=[
            pl.BlockSpec((tm, KL), lambda i: (i, 0)),
            pl.BlockSpec((KL, OL), lambda i: (0, 0)),
        ],
        out_specs=pl.BlockSpec((tm, OL), lambda i: (i, 0)),
        compiler_params=pltpu.CompilerParams(
            dimension_semantics=("parallel",),
            vmem_limit_bytes=vmem_limit,
        ),
        cost_estimate=cost,
    )(x2, P)

    return out.reshape(N, C, Ho, Wo)


# ----------------------------------------------------------------------------
# Main
# ----------------------------------------------------------------------------
if __name__ == "__main__":
    key = jax.random.PRNGKey(0)
    kx, kw, kb = jax.random.split(key, 3)

    N, C, H, W = 2, 4, 16, 16
    x = jax.random.normal(kx, (N, C, H, W), dtype=jnp.float32)
    weight = jax.random.normal(kw, (C, C, 3, 3), dtype=jnp.float32) * 0.1
    bias = jax.random.normal(kb, (C,), dtype=jnp.float32) * 0.1

    # ---- with_conv=True path ----
    x_pad = jnp.pad(x, ((0, 0), (0, 0), (0, 1), (0, 1)))
    y_ref = jax.lax.conv_general_dilated(
        x_pad, weight, window_strides=(2, 2), padding="VALID",
        dimension_numbers=("NCHW", "OIHW", "NCHW"),
    ) + bias.reshape(1, C, 1, 1)

    y_conv = downsample2d_with_conv(x, weight, bias)
    jax.block_until_ready(y_conv)
    assert y_conv.shape == (N, C, 8, 8), y_conv.shape
    err = float(jnp.max(jnp.abs(y_conv - y_ref)))
    assert jnp.allclose(y_conv, y_ref, atol=1e-2, rtol=1e-2), f"conv mismatch {err}"

    # bf16 MXU-operand / f32-accumulate fast path (v6e / v7x feedback item).
    y_conv_bf16 = downsample2d_with_conv(x, weight, bias, mxu_dtype=jnp.bfloat16)
    jax.block_until_ready(y_conv_bf16)
    err = float(jnp.max(jnp.abs(y_conv_bf16 - y_ref)))
    assert jnp.allclose(y_conv_bf16, y_ref, atol=5e-2, rtol=5e-2), \
        f"bf16 conv mismatch {err}"

    # ---- with_conv=False path ----
    y_pool = downsample2d_avgpool(x)
    jax.block_until_ready(y_pool)
    y_pool_ref = jnp.mean(x.reshape(N, C, H // 2, 2, W // 2, 2), axis=(3, 5))
    assert y_pool.shape == (N, C, 8, 8), y_pool.shape
    err = float(jnp.max(jnp.abs(y_pool - y_pool_ref)))
    assert jnp.allclose(y_pool, y_pool_ref, atol=1e-2, rtol=1e-2), \
        f"avgpool mismatch {err}"

    print("KERNEL_OK")
</pallas_src>

<mosaic_0001>
module attributes {stable_mosaic.version = 11 : i64} {
  func.func @_conv_kernel(%arg0: i32, %arg1: i32, %arg2: i32, %arg3: memref<1x1x152x16xf32, #tpu.memory_space<vmem>>, %arg4: memref<36x128xf32, #tpu.memory_space<vmem>>, %arg5: memref<1x128xf32, #tpu.memory_space<vmem>>, %arg6: memref<1x1x128x128xf32, #tpu.memory_space<vmem>>, %arg7: memref<128x128xf32, #tpu.memory_space<vmem>>) attributes {dimension_semantics = [#tpu.dimension_semantics<parallel>, #tpu.dimension_semantics<parallel>, #tpu.dimension_semantics<parallel>], iteration_bounds = array<i64: 1, 2, 1>, scalar_prefetch = 0 : i64, scratch_operands = 1 : i64, tpu.core_type = #tpu.core_type<tc>, window_params = [{transform_indices = @transform_0, window_bounds = array<i64: 1, 1, 152, 16>}, {transform_indices = @transform_1, window_bounds = array<i64: 36, 128>}, {transform_indices = @transform_2, window_bounds = array<i64: 1, 128>}, {transform_indices = @transform_3, window_bounds = array<i64: 1, 1, 128, 128>}]} {
    %c0 = arith.constant 0 : index
    %c0_0 = arith.constant 0 : index
    %c0_1 = arith.constant 0 : index
    %c0_2 = arith.constant 0 : index
    %0 = vector.load %arg3[%c0, %c0_0, %c0_1, %c0_2] : memref<1x1x152x16xf32, #tpu.memory_space<vmem>>, vector<1x1x128x16xf32>
    %1 = vector.shape_cast %0 : vector<1x1x128x16xf32> to vector<128x16xf32>
    %c0_3 = arith.constant 0 : index
    %c0_4 = arith.constant 0 : index
    %2 = vector.load %arg4[%c0_3, %c0_4] : memref<36x128xf32, #tpu.memory_space<vmem>>, vector<16x128xf32>
    %cst = arith.constant dense<0.000000e+00> : vector<128x128xf32>
    %3 = tpu.matmul %1, %2, %cst {dimension_numbers = #tpu.dot_dimension_numbers<[1], [0], [0], [1], [0, 0, 1, 1], [], []>} : vector<128x16xf32>, vector<16x128xf32>, vector<128x128xf32> -> vector<128x128xf32>
    %c0_5 = arith.constant 0 : index
    %c0_6 = arith.constant 0 : index
    %4 = vector.load %arg7[%c0_5, %c0_6] : memref<128x128xf32, #tpu.memory_space<vmem>>, vector<128x128xf32>
    tpu.vector_store %arg7[%c0_5, %c0_6], %3 {strides = array<i32>} : memref<128x128xf32, #tpu.memory_space<vmem>>, vector<128x128xf32>,
    %c0_7 = arith.constant 0 : index
    %c0_8 = arith.constant 0 : index
    %c16 = arith.constant 16 : index
    %c0_9 = arith.constant 0 : index
    %5 = vector.load %arg3[%c0_7, %c0_8, %c16, %c0_9] : memref<1x1x152x16xf32, #tpu.memory_space<vmem>>, vector<1x1x128x8xf32>
    %6 = vector.shape_cast %5 : vector<1x1x128x8xf32> to vector<128x8xf32>
    %c16_10 = arith.constant 16 : index
    %c0_11 = arith.constant 0 : index
    %7 = vector.load %arg4[%c16_10, %c0_11] : memref<36x128xf32, #tpu.memory_space<vmem>>, vector<8x128xf32>
    %cst_12 = arith.constant dense<0.000000e+00> : vector<128x128xf32>
    %8 = tpu.matmul %6, %7, %cst_12 {dimension_numbers = #tpu.dot_dimension_numbers<[1], [0], [0], [1], [0, 0, 1, 1], [], []>} : vector<128x8xf32>, vector<8x128xf32>, vector<128x128xf32> -> vector<128x128xf32>
    %c0_13 = arith.constant 0 : index
    %c0_14 = arith.constant 0 : index
    %9 = vector.load %arg7[%c0_13, %c0_14] : memref<128x128xf32, #tpu.memory_space<vmem>>, vector<128x128xf32>
    %10 = arith.addf %9, %8 : vector<128x128xf32>
    %c0_15 = arith.constant 0 : index
    %c0_16 = arith.constant 0 : index
    %11 = vector.load %arg7[%c0_15, %c0_16] : memref<128x128xf32, #tpu.memory_space<vmem>>, vector<128x128xf32>
    tpu.vector_store %arg7[%c0_15, %c0_16], %10 {strides = array<i32>} : memref<128x128xf32, #tpu.memory_space<vmem>>, vector<128x128xf32>,
    %c0_17 = arith.constant 0 : index
    %c0_18 = arith.constant 0 : index
    %c1 = arith.constant 1 : index
    %c0_19 = arith.constant 0 : index
    %12 = vector.load %arg3[%c0_17, %c0_18, %c1, %c0_19] : memref<1x1x152x16xf32, #tpu.memory_space<vmem>>, vector<1x1x128x4xf32>
    %13 = vector.shape_cast %12 : vector<1x1x128x4xf32> to vector<128x4xf32>
    %c24 = arith.constant 24 : index
    %c0_20 = arith.constant 0 : index
    %14 = vector.load %arg4[%c24, %c0_20] : memref<36x128xf32, #tpu.memory_space<vmem>>, vector<4x128xf32>
    %cst_21 = arith.constant dense<0.000000e+00> : vector<128x128xf32>
    %15 = tpu.matmul %13, %14, %cst_21 {dimension_numbers = #tpu.dot_dimension_numbers<[1], [0], [0], [1], [0, 0, 1, 1], [], []>} : vector<128x4xf32>, vector<4x128xf32>, vector<128x128xf32> -> vector<128x128xf32>
    %c0_22 = arith.constant 0 : index
    %c0_23 = arith.constant 0 : index
    %16 = vector.load %arg7[%c0_22, %c0_23] : memref<128x128xf32, #tpu.memory_space<vmem>>, vector<128x128xf32>
    %17 = arith.addf %16, %15 : vector<128x128xf32>
    %c0_24 = arith.constant 0 : index
    %c0_25 = arith.constant 0 : index
    %18 = vector.load %arg7[%c0_24, %c0_25] : memref<128x128xf32, #tpu.memory_space<vmem>>, vector<128x128xf32>
    tpu.vector_store %arg7[%c0_24, %c0_25], %17 {strides = array<i32>} : memref<128x128xf32, #tpu.memory_space<vmem>>, vector<128x128xf32>,
    %c0_26 = arith.constant 0 : index
    %c0_27 = arith.constant 0 : index
    %c1_28 = arith.constant 1 : index
    %c8 = arith.constant 8 : index
    %19 = vector.load %arg3[%c0_26, %c0_27, %c1_28, %c8] : memref<1x1x152x16xf32, #tpu.memory_space<vmem>>, vector<1x1x128x4xf32>
    %20 = vector.shape_cast %19 : vector<1x1x128x4xf32> to vector<128x4xf32>
    %c28 = arith.constant 28 : index
    %c0_29 = arith.constant 0 : index
    %21 = vector.load %arg4[%c28, %c0_29] : memref<36x128xf32, #tpu.memory_space<vmem>>, vector<4x128xf32>
    %cst_30 = arith.constant dense<0.000000e+00> : vector<128x128xf32>
    %22 = tpu.matmul %20, %21, %cst_30 {dimension_numbers = #tpu.dot_dimension_numbers<[1], [0], [0], [1], [0, 0, 1, 1], [], []>} : vector<128x4xf32>, vector<4x128xf32>, vector<128x128xf32> -> vector<128x128xf32>
    %c0_31 = arith.constant 0 : index
    %c0_32 = arith.constant 0 : index
    %23 = vector.load %arg7[%c0_31, %c0_32] : memref<128x128xf32, #tpu.memory_space<vmem>>, vector<128x128xf32>
    %24 = arith.addf %23, %22 : vector<128x128xf32>
    %c0_33 = arith.constant 0 : index
    %c0_34 = arith.constant 0 : index
    %25 = vector.load %arg7[%c0_33, %c0_34] : memref<128x128xf32, #tpu.memory_space<vmem>>, vector<128x128xf32>
    tpu.vector_store %arg7[%c0_33, %c0_34], %24 {strides = array<i32>} : memref<128x128xf32, #tpu.memory_space<vmem>>, vector<128x128xf32>,
    %c0_35 = arith.constant 0 : index
    %c0_36 = arith.constant 0 : index
    %c17 = arith.constant 17 : index
    %c0_37 = arith.constant 0 : index
    %26 = vector.load %arg3[%c0_35, %c0_36, %c17, %c0_37] : memref<1x1x152x16xf32, #tpu.memory_space<vmem>>, vector<1x1x128x4xf32>
    %27 = vector.shape_cast %26 : vector<1x1x128x4xf32> to vector<128x4xf32>
    %c32 = arith.constant 32 : index
    %c0_38 = arith.constant 0 : index
    %28 = vector.load %arg4[%c32, %c0_38] : memref<36x128xf32, #tpu.memory_space<vmem>>, vector<4x128xf32>
    %cst_39 = arith.constant dense<0.000000e+00> : vector<128x128xf32>
    %29 = tpu.matmul %27, %28, %cst_39 {dimension_numbers = #tpu.dot_dimension_numbers<[1], [0], [0], [1], [0, 0, 1, 1], [], []>} : vector<128x4xf32>, vector<4x128xf32>, vector<128x128xf32> -> vector<128x128xf32>
    %c0_40 = arith.constant 0 : index
    %c0_41 = arith.constant 0 : index
    %30 = vector.load %arg7[%c0_40, %c0_41] : memref<128x128xf32, #tpu.memory_space<vmem>>, vector<128x128xf32>
    %31 = arith.addf %30, %29 : vector<128x128xf32>
    %c0_42 = arith.constant 0 : index
    %c0_43 = arith.constant 0 : index
    %32 = vector.load %arg7[%c0_42, %c0_43] : memref<128x128xf32, #tpu.memory_space<vmem>>, vector<128x128xf32>
    tpu.vector_store %arg7[%c0_42, %c0_43], %31 {strides = array<i32>} : memref<128x128xf32, #tpu.memory_space<vmem>>, vector<128x128xf32>,
    %c0_44 = arith.constant 0 : index
    %c0_45 = arith.constant 0 : index
    %33 = vector.load %arg7[%c0_44, %c0_45] : memref<128x128xf32, #tpu.memory_space<vmem>>, vector<128x128xf32>
    %c0_46 = arith.constant 0 : index
    %c0_47 = arith.constant 0 : index
    %34 = vector.load %arg5[%c0_46, %c0_47] : memref<1x128xf32, #tpu.memory_space<vmem>>, vector<1x128xf32>
    %35 = vector.broadcast %34 : vector<1x128xf32> to vector<128x128xf32>
    %36 = arith.addf %33, %35 : vector<128x128xf32>
    %c0_48 = arith.constant 0 : index
    %c0_49 = arith.constant 0 : index
    %c0_50 = arith.constant 0 : index
    %c0_51 = arith.constant 0 : index
    %37 = vector.load %arg6[%c0_48, %c0_49, %c0_50, %c0_51] : memref<1x1x128x128xf32, #tpu.memory_space<vmem>>, vector<1x1x128x128xf32>
    %38 = vector.shape_cast %37 : vector<1x1x128x128xf32> to vector<128x128xf32>
    %39 = vector.shape_cast %36 : vector<128x128xf32> to vector<1x1x128x128xf32>
    tpu.vector_store %arg6[%c0_48, %c0_49, %c0_50, %c0_51], %39 {strides = array<i32>} : memref<1x1x128x128xf32, #tpu.memory_space<vmem>>, vector<1x1x128x128xf32>,
    return
  }
  func.func @transform_0(%arg0: i32, %arg1: i32, %arg2: i32) -> (i32, i32, i32, i32) {
    %c0_i32 = arith.constant 0 : i32
    %c0_i32_0 = arith.constant 0 : i32
    %c0_i32_1 = arith.constant 0 : i32
    return %arg1, %arg2, %c0_i32, %c0_i32_0 : i32, i32, i32, i32
  }
  func.func @transform_1(%arg0: i32, %arg1: i32, %arg2: i32) -> (i32, i32) {
    %c0_i32 = arith.constant 0 : i32
    %c0_i32_0 = arith.constant 0 : i32
    return %c0_i32, %arg0 : i32, i32
  }
  func.func @transform_2(%arg0: i32, %arg1: i32, %arg2: i32) -> (i32, i32) {
    %c0_i32 = arith.constant 0 : i32
    %c0_i32_0 = arith.constant 0 : i32
    return %c0_i32, %arg0 : i32, i32
  }
  func.func @transform_3(%arg0: i32, %arg1: i32, %arg2: i32) -> (i32, i32, i32, i32) {
    %c0_i32 = arith.constant 0 : i32
    %c0_i32_0 = arith.constant 0 : i32
    return %arg1, %arg2, %c0_i32, %arg0 : i32, i32, i32, i32
  }
}

</mosaic_0001>

<llo_original>
// kernel: downsample2d_with_conv.1
$region0: #{downsample2d_with_conv.1}
  #allocation0 [shape = 'u32[]', space=smem, size = 0x4, offset = 0x4, fixed_abs, tag = 'smem constant byte address 0x4 - core index']
  #allocation1 [shape = 'u32[144,128]{1,0:T(1,128)}', space=vmem, size = 0x12000, scoped, tag = 'internal scratch']
  #allocation2 [shape = 'f32[128,128]{1,0:T(8,128)}', space=vmem, size = 0x10000, scoped, tag = 'scratch operand']
  %s0 = inlined_call_operand.vmem [shape: f32[2,1,152,16], index: 0, kind: input, shape index: {}]
  %s1 = inlined_call_operand.vmem [shape: f32[36,128], index: 1, kind: input, shape index: {}]
  %s2 = inlined_call_operand.vmem [shape: f32[1,128], index: 2, kind: input, shape index: {}]
  %s3 = inlined_call_operand.vmem [shape: f32[2,1,128,128], index: 3, kind: output, shape index: {}]
  %s4 = sld [smem:[#allocation0]]
  $region45: #{downsample2d_with_conv.1} parent=0
    _
  %s6 = ssub.s32 1, %s4
  %s7 = scalar_select 0, %s6, %s4
  loop: start=0, step=1, limit=4
  $region2: #{downsample2d_with_conv.1} parent=0 // loop_pre_header
    _
  $region3: #{downsample2d_with_conv.1} parent=0 // loop_header
    %s9 = sphi 0, %s13
    %p10 = scmp.ge.s32.totalorder %s9, 4
    %s16 = sphi 0, %s35
    %s17 = sphi 0, %s31
    %s18 = sphi 0, %s27
    %s19 = sphi 0, %s16
    %s20 = sphi 0, %s17
    %s21 = sphi 0, %s18
    %s22 = sphi 0, %s19
    %s23 = sphi 0, %s20
    %s24 = sphi 0, %s21
    %s40 = sphi 0, %s42
    %s43 = sphi 0, %s40
    %s44 = sphi 0, %s43
    %s60 = sphi 0, %s44
    %s66 = sphi 0, %s68
    %s69 = sphi 0, %s66
    %s70 = sphi 0, %s69
    %s86 = sphi 0, %s70
    %s92 = sphi 0, %s94
    %s95 = sphi 0, %s92
    %s96 = sphi 0, %s95
    %s112 = sphi 0, %s96
    %s122 = sphi 0, %s124
    %s125 = sphi 0, %s122
    %s126 = sphi 0, %s125
    %s142 = sphi 0, %s126
  $region4: #{downsample2d_with_conv.1} parent=0 // loop_header_branch
    %12 = sbr.rel (%p10) target = $region8
  $region5: #{downsample2d_with_conv.1} parent=0 // loop_body
    %s14 = ssub.s32 %s9, 1
    %s15 = ssub.s32 %s9, 2
    %s25 = sadd.s32 1, %s18
    %p26 = scmp.ge.s32.totalorder %s25, 1
    %s27 = scalar_select %p26, 0, %s25
    %s28 = sadd.s32 1, %s17
    %s29 = scalar_select %p26, %s28, %s17
    %p30 = scmp.ge.s32.totalorder %s29, 2
    %s31 = scalar_select %p30, 0, %s29
    %s32 = sadd.s32 1, %s16
    %s33 = scalar_select %p30, %s32, %s16
    %p34 = scmp.ge.s32.totalorder %s33, 1
    %s35 = scalar_select %p34, 0, %s33
    %s36 = ssub.s32 %s17, %s31
    %s37 = ssub.s32 %s18, %s27
    %s38 = sor.u32 %s36, %s37
    %p39 = scmp.eq.s32.totalorder %s38, 0
    %s41 = sadd.s32 %s40, 1
    %s42 = scalar_select %p39, %s40, %s41
    %p45 = pneg %p39
    %p46 = scmp.eq.s32.totalorder %s9, 1
    %p47 = por %p45, %p46
    %p48 = scmp.ne.s32.totalorder %s40, %s43
    %p49 = scmp.eq.s32.totalorder %s9, 0
    %p50 = por %p48, %p49
    %p51 = scmp.ne.s32.totalorder %s40, %s43
    %p52 = scmp.eq.s32.totalorder %s14, 1
    %p53 = por %p51, %p52
    %p54 = scmp.ne.s32.totalorder %s43, %s44
    %p55 = scmp.eq.s32.totalorder %s14, 0
    %p56 = por %p54, %p55
    %p57 = scmp.ne.s32.totalorder %s43, %s44
    %p58 = scmp.eq.s32.totalorder %s15, 1
    %p59 = por %p57, %p58
    %p61 = scmp.ne.s32.totalorder %s44, %s60
    %p62 = scmp.eq.s32.totalorder %s15, 0
    %p63 = por %p61, %p62
    %s64 = ssub.s32 %s16, %s35
    %p65 = scmp.eq.s32.totalorder %s64, 0
    %s67 = sadd.s32 %s66, 1
    %s68 = scalar_select %p65, %s66, %s67
    %p71 = pneg %p65
    %p72 = scmp.eq.s32.totalorder %s9, 1
    %p73 = por %p71, %p72
    %p74 = scmp.ne.s32.totalorder %s66, %s69
    %p75 = scmp.eq.s32.totalorder %s9, 0
    %p76 = por %p74, %p75
    %p77 = scmp.ne.s32.totalorder %s66, %s69
    %p78 = scmp.eq.s32.totalorder %s14, 1
    %p79 = por %p77, %p78
    %p80 = scmp.ne.s32.totalorder %s69, %s70
    %p81 = scmp.eq.s32.totalorder %s14, 0
    %p82 = por %p80, %p81
    %p83 = scmp.ne.s32.totalorder %s69, %s70
    %p84 = scmp.eq.s32.totalorder %s15, 1
    %p85 = por %p83, %p84
    %p87 = scmp.ne.s32.totalorder %s70, %s86
    %p88 = scmp.eq.s32.totalorder %s15, 0
    %p89 = por %p87, %p88
    %s90 = ssub.s32 %s16, %s35
    %p91 = scmp.eq.s32.totalorder %s90, 0
    %s93 = sadd.s32 %s92, 1
    %s94 = scalar_select %p91, %s92, %s93
    %p97 = pneg %p91
    %p98 = scmp.eq.s32.totalorder %s9, 1
    %p99 = por %p97, %p98
    %p100 = scmp.ne.s32.totalorder %s92, %s95
    %p101 = scmp.eq.s32.totalorder %s9, 0
    %p102 = por %p100, %p101
    %p103 = scmp.ne.s32.totalorder %s92, %s95
    %p104 = scmp.eq.s32.totalorder %s14, 1
    %p105 = por %p103, %p104
    %p106 = scmp.ne.s32.totalorder %s95, %s96
    %p107 = scmp.eq.s32.totalorder %s14, 0
    %p108 = por %p106, %p107
    %p109 = scmp.ne.s32.totalorder %s95, %s96
    %p110 = scmp.eq.s32.totalorder %s15, 1
    %p111 = por %p109, %p110
    %p113 = scmp.ne.s32.totalorder %s96, %s112
    %p114 = scmp.eq.s32.totalorder %s15, 0
    %p115 = por %p113, %p114
    %s116 = ssub.s32 %s17, %s31
    %s117 = ssub.s32 %s18, %s27
    %s118 = sor.u32 %s116, %s117
    %s119 = ssub.s32 %s16, %s35
    %s120 = sor.u32 %s118, %s119
    %p121 = scmp.eq.s32.totalorder %s120, 0
    %s123 = sadd.s32 %s122, 1
    %s124 = scalar_select %p121, %s122, %s123
    %p127 = pneg %p121
    %p128 = scmp.eq.s32.totalorder %s9, 1
    %p129 = por %p127, %p128
    %p130 = scmp.ne.s32.totalorder %s122, %s125
    %p131 = scmp.eq.s32.totalorder %s9, 0
    %p132 = por %p130, %p131
    %p133 = scmp.ne.s32.totalorder %s122, %s125
    %p134 = scmp.eq.s32.totalorder %s14, 1
    %p135 = por %p133, %p134
    %p136 = scmp.ne.s32.totalorder %s125, %s126
    %p137 = scmp.eq.s32.totalorder %s14, 0
    %p138 = por %p136, %p137
    %p139 = scmp.ne.s32.totalorder %s125, %s126
    %p140 = scmp.eq.s32.totalorder %s15, 1
    %p141 = por %p139, %p140
    %p143 = scmp.ne.s32.totalorder %s126, %s142
    %p144 = scmp.eq.s32.totalorder %s15, 0
    %p145 = por %p143, %p144
    %p146 = scmp.le.s32.totalorder 1, %s9
    %p147 = scmp.lt.s32.totalorder %s9, 3
    %p148 = pnand %p146, %p147
    %p149 = pneg %p148
    // Predicated region
    $region9: #{downsample2d_with_conv.1} parent=5 // pred_check
      _
    $region10: #{downsample2d_with_conv.1} parent=5 // pred_check_branch
      %151 = sbr.rel (%p148) target = $region12
    $region11: #{downsample2d_with_conv.1} parent=5 // pred_region
      %s152 = ssub.s32 %s9, 1
      // Predicated region
      $region13: #{downsample2d_with_conv.1} parent=11 // pred_check
        %p153 = pneg %p82
      $region14: #{downsample2d_with_conv.1} parent=11 // pred_check_branch
        %155 = sbr.rel (%p153) target = $region16
      $region15: #{downsample2d_with_conv.1} parent=11 // pred_region
        %p156 = scmp.lt.s32.totalorder %s19, 0
        %s157 = scalar_select %p156, %s19, 0
        %s158 = smul.addr %s157, 8
        %s159 = scalar_lea.vmem %s1, %s158
      $region16: #{downsample2d_with_conv.1} parent=11 // pred_fallthru
        _
      // Predicated region
      $region17: #{downsample2d_with_conv.1} parent=11 // pred_check
        %p160 = pneg %p108
      $region18: #{downsample2d_with_conv.1} parent=11 // pred_check_branch
        %162 = sbr.rel (%p160) target = $region20
      $region19: #{downsample2d_with_conv.1} parent=11 // pred_region
        %p163 = scmp.lt.s32.totalorder %s19, 0
        %s164 = scalar_select %p163, %s19, 0
        %s165 = scalar_lea.vmem %s2, %s164
      $region20: #{downsample2d_with_conv.1} parent=11 // pred_fallthru
        _
    $region12: #{downsample2d_with_conv.1} parent=5 // pred_fallthru
      _
    %p166 = scmp.lt.s32.totalorder %s9, 2
    // Predicated region
    $region21: #{downsample2d_with_conv.1} parent=5 // pred_check
      %p167 = pneg %p166
    $region22: #{downsample2d_with_conv.1} parent=5 // pred_check_branch
      %169 = sbr.rel (%p167) target = $region24
    $region23: #{downsample2d_with_conv.1} parent=5 // pred_region
      // Predicated region
      $region25: #{downsample2d_with_conv.1} parent=23 // pred_check
        %p170 = pneg %p50
      $region26: #{downsample2d_with_conv.1} parent=23 // pred_check_branch
        %172 = sbr.rel (%p170) target = $region28
      $region27: #{downsample2d_with_conv.1} parent=23 // pred_region
        %p173 = scmp.lt.s32.totalorder %s17, 1
        %s174 = scalar_select %p173, %s17, 1
        %p175 = scmp.lt.s32.totalorder %s18, 0
        %s176 = scalar_select %p175, %s18, 0
        %s177 = smul.addr %s176, 19
        %s178 = smul.addr %s174, 19
        %s179 = sadd.s32 %s177, %s178
        %s180 = smul.addr %s179, 8
        %s181 = scalar_lea.vmem %s0, %s180
      $region28: #{downsample2d_with_conv.1} parent=23 // pred_fallthru
        _
    $region24: #{downsample2d_with_conv.1} parent=5 // pred_fallthru
      _
    %p182 = scmp.le.s32.totalorder 1, %s9
    %p183 = scmp.lt.s32.totalorder %s9, 3
    %p184 = pnand %p182, %p183
    %p185 = pneg %p184
    // Predicated region
    $region29: #{downsample2d_with_conv.1} parent=5 // pred_check
      _
    $region30: #{downsample2d_with_conv.1} parent=5 // pred_check_branch
      %187 = sbr.rel (%p184) target = $region32
    $region31: #{downsample2d_with_conv.1} parent=5 // pred_region
      %s188 = ssub.s32 %s9, 1
      %p189 = scmp.lt.s32.totalorder %s20, 1
      %s190 = scalar_select %p189, %s20, 1
      %p191 = scmp.lt.s32.totalorder %s21, 0
      %s192 = scalar_select %p191, %s21, 0
      %s193 = smul.addr %s192, 19
      %s194 = smul.addr %s190, 19
      %s195 = sadd.s32 %s193, %s194
      %s196 = smul.addr %s195, 8
      %s197 = scalar_lea.vmem %s0, %s196
      %p198 = pneg %p56
      %p199 = pneg %p53
      %p200 = scmp.lt.s32.totalorder %s19, 0
      %s201 = scalar_select %p200, %s19, 0
      %s202 = smul.addr %s201, 8
      %s203 = scalar_lea.vmem %s1, %s202
      %p204 = pneg %p82
      %p205 = pneg %p79
      %p206 = scmp.lt.s32.totalorder %s19, 0
      %s207 = scalar_select %p206, %s19, 0
      %s208 = scalar_lea.vmem %s2, %s207
      %p209 = pneg %p108
      %p210 = pneg %p105
      %p211 = pneg %p138
      %p212 = pneg %p135
      %p213 = scmp.lt.s32.totalorder %s20, 1
      %s214 = scalar_select %p213, %s20, 1
      %p215 = scmp.lt.s32.totalorder %s21, 0
      %s216 = scalar_select %p215, %s21, 0
      %p217 = scmp.lt.s32.totalorder %s19, 0
      %s218 = scalar_select %p217, %s19, 0
      %s219 = smul.addr %s216, 16
      %s220 = sadd.s32 %s218, %s219
      %s221 = smul.addr %s214, 16
      %s222 = sadd.s32 %s220, %s221
      %s223 = smul.addr %s222, 8
      %s224 = scalar_lea.vmem %s3, %s223
      %p225 = scmp.lt.s32.totalorder %s20, 1
      %s226 = scalar_select %p225, %s20, 1
      %p227 = scmp.lt.s32.totalorder %s21, 0
      %s228 = scalar_select %p227, %s21, 0
      %s229 = smul.addr %s228, 19
      %s230 = smul.addr %s226, 19
      %s231 = sadd.s32 %s229, %s230
      %s232 = smul.addr %s231, 8
      %s233 = scalar_lea.vmem %s0, %s232
      %p234 = scmp.lt.s32.totalorder %s19, 0
      %s235 = scalar_select %p234, %s19, 0
      %s236 = smul.addr %s235, 8
      %s237 = scalar_lea.vmem %s1, %s236
      %p238 = scmp.lt.s32.totalorder %s19, 0
      %s239 = scalar_select %p238, %s19, 0
      %s240 = scalar_lea.vmem %s2, %s239
      %p241 = scmp.lt.s32.totalorder %s20, 1
      %s242 = scalar_select %p241, %s20, 1
      %p243 = scmp.lt.s32.totalorder %s21, 0
      %s244 = scalar_select %p243, %s21, 0
      %p245 = scmp.lt.s32.totalorder %s19, 0
      %s246 = scalar_select %p245, %s19, 0
      %s247 = smul.addr %s244, 16
      %s248 = sadd.s32 %s246, %s247
      %s249 = smul.addr %s242, 16
      %s250 = sadd.s32 %s248, %s249
      %s251 = smul.addr %s250, 8
      %s252 = scalar_lea.vmem %s3, %s251
      %v253 = vld [vmem:[%s233] sm:$0xff]
      %v254 = vld [vmem:[%s233 + $0x8] sm:$0xff]
      %v255 = vld [vmem:[%s233 + $0x10] sm:$0xff]
      %v256 = vld [vmem:[%s233 + $0x18] sm:$0xff]
      %v257 = vld [vmem:[%s233 + $0x20] sm:$0xff]
      %v258 = vld [vmem:[%s233 + $0x28] sm:$0xff]
      %v259 = vld [vmem:[%s233 + $0x30] sm:$0xff]
      %v260 = vld [vmem:[%s233 + $0x38] sm:$0xff]
      %v261 = vld [vmem:[%s233 + $0x40] sm:$0xff]
      %v262 = vld [vmem:[%s233 + $0x48] sm:$0xff]
      %v263 = vld [vmem:[%s233 + $0x50] sm:$0xff]
      %v264 = vld [vmem:[%s233 + $0x58] sm:$0xff]
      %v265 = vld [vmem:[%s233 + $0x60] sm:$0xff]
      %v266 = vld [vmem:[%s233 + $0x68] sm:$0xff]
      %v267 = vld [vmem:[%s233 + $0x70] sm:$0xff]
      %v268 = vld [vmem:[%s233 + $0x78] sm:$0xff]
      %v269 = vld [vmem:[%s237] sm:$0xff]
      %v270 = vld [vmem:[%s237 + $0x8] sm:$0xff]
      %vm271 = vcmask 130048
      %v273 = vsel %vm271, %v253, 0
      %v276 = vsel %vm271, %v254, 0
      %v279 = vsel %vm271, %v255, 0
      %v282 = vsel %vm271, %v256, 0
      %v285 = vsel %vm271, %v257, 0
      %v288 = vsel %vm271, %v258, 0
      %v291 = vsel %vm271, %v259, 0
      %v294 = vsel %vm271, %v260, 0
      %v297 = vsel %vm271, %v261, 0
      %v300 = vsel %vm271, %v262, 0
      %v303 = vsel %vm271, %v263, 0
      %v306 = vsel %vm271, %v264, 0
      %v309 = vsel %vm271, %v265, 0
      %v312 = vsel %vm271, %v266, 0
      %v315 = vsel %vm271, %v267, 0
      %v318 = vsel %vm271, %v268, 0
      %320 = vmatprep.subr.mxu0 0.0
      %321 = vmatpush1.msra.mxu0 0.0
      %322 = vmatprep.subr.mxu0 0.0
      %323 = vmatpush1.msra.mxu0 0.0
      %324 = vmatprep.subr.mxu0 0.0
      %325 = vmatpush1.msra.mxu0 0.0
      %326 = vmatprep.subr.mxu0 0.0
      %327 = vmatpush1.msra.mxu0 0.0
      %328 = vmatprep.subr.mxu0 0.0
      %329 = vmatpush1.msra.mxu0 0.0
      %330 = vmatprep.subr.mxu0 0.0
      %331 = vmatpush1.msra.mxu0 0.0
      %332 = vmatprep.subr.mxu0 0.0
      %333 = vmatpush1.msra.mxu0 0.0
      %334 = vmatprep.subr.mxu0 0.0
      %335 = vmatpush1.msra.mxu0 0.0
      %336 = vmatprep.subr.mxu0 0.0
      %337 = vmatpush1.msra.mxu0 0.0
      %338 = vmatprep.subr.mxu0 0.0
      %339 = vmatpush1.msra.mxu0 0.0
      %340 = vmatprep.subr.mxu0 0.0
      %341 = vmatpush1.msra.mxu0 0.0
      %342 = vmatprep.subr.mxu0 0.0
      %343 = vmatpush1.msra.mxu0 0.0
      %344 = vmatprep.subr.mxu0 0.0
      %345 = vmatpush1.msra.mxu0 0.0
      %346 = vmatprep.subr.mxu0 0.0
      %347 = vmatpush1.msra.mxu0 0.0
      %348 = vmatprep.subr.mxu0 0.0
      %349 = vmatpush1.msra.mxu0 %v270
      %350 = vmatprep.subr.mxu0 0.0
      %351 = vmatpush1.msra.mxu0 %v269
      %352 = vmatprep.subr.mxu0 0.0
      %353 = vmatpush2.msra.mxu0 0.0
      %354 = vmatprep.subr.mxu0 0.0
      %355 = vmatpush2.msra.mxu0 0.0
      %356 = vmatprep.subr.mxu0 0.0
      %357 = vmatpush2.msra.mxu0 0.0
      %358 = vmatprep.subr.mxu0 0.0
      %359 = vmatpush2.msra.mxu0 0.0
      %360 = vmatprep.subr.mxu0 0.0
      %361 = vmatpush2.msra.mxu0 0.0
      %362 = vmatprep.subr.mxu0 0.0
      %363 = vmatpush2.msra.mxu0 0.0
      %364 = vmatprep.subr.mxu0 0.0
      %365 = vmatpush2.msra.mxu0 0.0
      %366 = vmatprep.subr.mxu0 0.0
      %367 = vmatpush2.msra.mxu0 0.0
      %368 = vmatprep.subr.mxu0 0.0
      %369 = vmatpush2.msra.mxu0 0.0
      %370 = vmatprep.subr.mxu0 0.0
      %371 = vmatpush2.msra.mxu0 0.0
      %372 = vmatprep.subr.mxu0 0.0
      %373 = vmatpush2.msra.mxu0 0.0
      %374 = vmatprep.subr.mxu0 0.0
      %375 = vmatpush2.msra.mxu0 0.0
      %376 = vmatprep.subr.mxu0 0.0
      %377 = vmatpush2.msra.mxu0 0.0
      %378 = vmatprep.subr.mxu0 0.0
      %379 = vmatpush2.msra.mxu0 0.0
      %380 = vmatprep.subr.mxu0 0.0
      %381 = vmatpush2.msra.mxu0 0.0
      %382 = vmatprep.subr.mxu0 0.0
      %383 = vmatpush2.msra.mxu0 0.0
      %384 = vmatprep.mubr.f32.mxu0 0.0
      %385 = vmatmul.mubr.f32.gmra.mxu0 %v273
      %v386 = vpop.f32.mrf.mxu0
      %v387 = vadd.f32 0.0, %v386
      %v388 = vpop.f32.mrf.mxu0
      %389 = vmatprep.mubr.f32.mxu0 0.0
      %390 = vmatmul.mubr.f32.gmra.mxu0 %v276
      %v391 = vpop.f32.mrf.mxu0
      %v392 = vadd.f32 0.0, %v391
      %v393 = vpop.f32.mrf.mxu0
      %394 = vmatprep.mubr.f32.mxu0 0.0
      %395 = vmatmul.mubr.f32.gmra.mxu0 %v279
      %v396 = vpop.f32.mrf.mxu0
      %v397 = vadd.f32 0.0, %v396
      %v398 = vpop.f32.mrf.mxu0
      %399 = vmatprep.mubr.f32.mxu0 0.0
      %400 = vmatmul.mubr.f32.gmra.mxu0 %v282
      %v401 = vpop.f32.mrf.mxu0
      %v402 = vadd.f32 0.0, %v401
      %v403 = vpop.f32.mrf.mxu0
      %404 = vmatprep.mubr.f32.mxu0 0.0
      %405 = vmatmul.mubr.f32.gmra.mxu0 %v285
      %v406 = vpop.f32.mrf.mxu0
      %v407 = vadd.f32 0.0, %v406
      %v408 = vpop.f32.mrf.mxu0
      %409 = vmatprep.mubr.f32.mxu0 0.0
      %410 = vmatmul.mubr.f32.gmra.mxu0 %v288
      %v411 = vpop.f32.mrf.mxu0
      %v412 = vadd.f32 0.0, %v411
      %v413 = vpop.f32.mrf.mxu0
      %414 = vmatprep.mubr.f32.mxu0 0.0
      %415 = vmatmul.mubr.f32.gmra.mxu0 %v291
      %v416 = vpop.f32.mrf.mxu0
      %v417 = vadd.f32 0.0, %v416
      %v418 = vpop.f32.mrf.mxu0
      %419 = vmatprep.mubr.f32.mxu0 0.0
      %420 = vmatmul.mubr.f32.gmra.mxu0 %v294
      %v421 = vpop.f32.mrf.mxu0
      %v422 = vadd.f32 0.0, %v421
      %v423 = vpop.f32.mrf.mxu0
      %424 = vmatprep.mubr.f32.mxu0 0.0
      %425 = vmatmul.mubr.f32.gmra.mxu0 %v297
      %v426 = vpop.f32.mrf.mxu0
      %v427 = vadd.f32 0.0, %v426
      %v428 = vpop.f32.mrf.mxu0
      %429 = vmatprep.mubr.f32.mxu0 0.0
      %430 = vmatmul.mubr.f32.gmra.mxu0 %v300
      %v431 = vpop.f32.mrf.mxu0
      %v432 = vadd.f32 0.0, %v431
      %v433 = vpop.f32.mrf.mxu0
      %434 = vmatprep.mubr.f32.mxu0 0.0
      %435 = vmatmul.mubr.f32.gmra.mxu0 %v303
      %v436 = vpop.f32.mrf.mxu0
      %v437 = vadd.f32 0.0, %v436
      %v438 = vpop.f32.mrf.mxu0
      %439 = vmatprep.mubr.f32.mxu0 0.0
      %440 = vmatmul.mubr.f32.gmra.mxu0 %v306
      %v441 = vpop.f32.mrf.mxu0
      %v442 = vadd.f32 0.0, %v441
      %v443 = vpop.f32.mrf.mxu0
      %444 = vmatprep.mubr.f32.mxu0 0.0
      %445 = vmatmul.mubr.f32.gmra.mxu0 %v309
      %v446 = vpop.f32.mrf.mxu0
      %v447 = vadd.f32 0.0, %v446
      %v448 = vpop.f32.mrf.mxu0
      %449 = vmatprep.mubr.f32.mxu0 0.0
      %450 = vmatmul.mubr.f32.gmra.mxu0 %v312
      %v451 = vpop.f32.mrf.mxu0
      %v452 = vadd.f32 0.0, %v451
      %v453 = vpop.f32.mrf.mxu0
      %454 = vmatprep.mubr.f32.mxu0 0.0
      %455 = vmatmul.mubr.f32.gmra.mxu0 %v315
      %v456 = vpop.f32.mrf.mxu0
      %v457 = vadd.f32 0.0, %v456
      %v458 = vpop.f32.mrf.mxu0
      %459 = vmatprep.mubr.f32.mxu0 0.0
      %460 = vmatmul.mubr.f32.gmra.mxu0 %v318
      %v461 = vpop.f32.mrf.mxu0
      %v462 = vadd.f32 0.0, %v461
      %v463 = vpop.f32.mrf.mxu0
      %464 = vdwg.mxu0
      %465 = vst [vmem:[#allocation2] sm:$0xff] %v387
      %466 = vst [vmem:[#allocation2 + $0x8] sm:$0xff] %v392
      %467 = vst [vmem:[#allocation2 + $0x10] sm:$0xff] %v397
      %468 = vst [vmem:[#allocation2 + $0x18] sm:$0xff] %v402
      %469 = vst [vmem:[#allocation2 + $0x20] sm:$0xff] %v407
      %470 = vst [vmem:[#allocation2 + $0x28] sm:$0xff] %v412
      %471 = vst [vmem:[#allocation2 + $0x30] sm:$0xff] %v417
      %472 = vst [vmem:[#allocation2 + $0x38] sm:$0xff] %v422
      %473 = vst [vmem:[#allocation2 + $0x40] sm:$0xff] %v427
      %474 = vst [vmem:[#allocation2 + $0x48] sm:$0xff] %v432
      %475 = vst [vmem:[#allocation2 + $0x50] sm:$0xff] %v437
      %476 = vst [vmem:[#allocation2 + $0x58] sm:$0xff] %v442
      %477 = vst [vmem:[#allocation2 + $0x60] sm:$0xff] %v447
      %478 = vst [vmem:[#allocation2 + $0x68] sm:$0xff] %v452
      %479 = vst [vmem:[#allocation2 + $0x70] sm:$0xff] %v457
      %480 = vst [vmem:[#allocation2 + $0x78] sm:$0xff] %v462
      %v481 = vld [vmem:[%s233 + $0x10] sm:$0xff]
      %v482 = vld [vmem:[%s233 + $0x18] sm:$0xff]
      %v483 = vld [vmem:[%s233 + $0x20] sm:$0xff]
      %v484 = vld [vmem:[%s233 + $0x28] sm:$0xff]
      %v485 = vld [vmem:[%s233 + $0x30] sm:$0xff]
      %v486 = vld [vmem:[%s233 + $0x38] sm:$0xff]
      %v487 = vld [vmem:[%s233 + $0x40] sm:$0xff]
      %v488 = vld [vmem:[%s233 + $0x48] sm:$0xff]
      %v489 = vld [vmem:[%s233 + $0x50] sm:$0xff]
      %v490 = vld [vmem:[%s233 + $0x58] sm:$0xff]
      %v491 = vld [vmem:[%s233 + $0x60] sm:$0xff]
      %v492 = vld [vmem:[%s233 + $0x68] sm:$0xff]
      %v493 = vld [vmem:[%s233 + $0x70] sm:$0xff]
      %v494 = vld [vmem:[%s233 + $0x78] sm:$0xff]
      %v495 = vld [vmem:[%s233 + $0x80] sm:$0xff]
      %v496 = vld [vmem:[%s233 + $0x88] sm:$0xff]
      %v497 = vld [vmem:[%s237 + $0x10] sm:$0xff]
      %vm498 = vcmask 64512
      %v500 = vsel %vm498, %v481, 0
      %v503 = vsel %vm498, %v482, 0
      %v506 = vsel %vm498, %v483, 0
      %v509 = vsel %vm498, %v484, 0
      %v512 = vsel %vm498, %v485, 0
      %v515 = vsel %vm498, %v486, 0
      %v518 = vsel %vm498, %v487, 0
      %v521 = vsel %vm498, %v488, 0
      %v524 = vsel %vm498, %v489, 0
      %v527 = vsel %vm498, %v490, 0
      %v530 = vsel %vm498, %v491, 0
      %v533 = vsel %vm498, %v492, 0
      %v536 = vsel %vm498, %v493, 0
      %v539 = vsel %vm498, %v494, 0
      %v542 = vsel %vm498, %v495, 0
      %v545 = vsel %vm498, %v496, 0
      %547 = vmatprep.subr.mxu0 0.0
      %548 = vmatpush1.msra.mxu0 0.0
      %549 = vmatprep.subr.mxu0 0.0
      %550 = vmatpush1.msra.mxu0 0.0
      %551 = vmatprep.subr.mxu0 0.0
      %552 = vmatpush1.msra.mxu0 0.0
      %553 = vmatprep.subr.mxu0 0.0
      %554 = vmatpush1.msra.mxu0 0.0
      %555 = vmatprep.subr.mxu0 0.0
      %556 = vmatpush1.msra.mxu0 0.0
      %557 = vmatprep.subr.mxu0 0.0
      %558 = vmatpush1.msra.mxu0 0.0
      %559 = vmatprep.subr.mxu0 0.0
      %560 = vmatpush1.msra.mxu0 0.0
      %561 = vmatprep.subr.mxu0 0.0
      %562 = vmatpush1.msra.mxu0 0.0
      %563 = vmatprep.subr.mxu0 0.0
      %564 = vmatpush1.msra.mxu0 0.0
      %565 = vmatprep.subr.mxu0 0.0
      %566 = vmatpush1.msra.mxu0 0.0
      %567 = vmatprep.subr.mxu0 0.0
      %568 = vmatpush1.msra.mxu0 0.0
      %569 = vmatprep.subr.mxu0 0.0
      %570 = vmatpush1.msra.mxu0 0.0
      %571 = vmatprep.subr.mxu0 0.0
      %572 = vmatpush1.msra.mxu0 0.0
      %573 = vmatprep.subr.mxu0 0.0
      %574 = vmatpush1.msra.mxu0 0.0
      %575 = vmatprep.subr.mxu0 0.0
      %576 = vmatpush1.msra.mxu0 0.0
      %577 = vmatprep.subr.mxu0 0.0
      %578 = vmatpush1.msra.mxu0 %v497
      %579 = vmatprep.subr.mxu0 0.0
      %580 = vmatpush2.msra.mxu0 0.0
      %581 = vmatprep.subr.mxu0 0.0
      %582 = vmatpush2.msra.mxu0 0.0
      %583 = vmatprep.subr.mxu0 0.0
      %584 = vmatpush2.msra.mxu0 0.0
      %585 = vmatprep.subr.mxu0 0.0
      %586 = vmatpush2.msra.mxu0 0.0
      %587 = vmatprep.subr.mxu0 0.0
      %588 = vmatpush2.msra.mxu0 0.0
      %589 = vmatprep.subr.mxu0 0.0
      %590 = vmatpush2.msra.mxu0 0.0
      %591 = vmatprep.subr.mxu0 0.0
      %592 = vmatpush2.msra.mxu0 0.0
      %593 = vmatprep.subr.mxu0 0.0
      %594 = vmatpush2.msra.mxu0 0.0
      %595 = vmatprep.subr.mxu0 0.0
      %596 = vmatpush2.msra.mxu0 0.0
      %597 = vmatprep.subr.mxu0 0.0
      %598 = vmatpush2.msra.mxu0 0.0
      %599 = vmatprep.subr.mxu0 0.0
      %600 = vmatpush2.msra.mxu0 0.0
      %601 = vmatprep.subr.mxu0 0.0
      %602 = vmatpush2.msra.mxu0 0.0
      %603 = vmatprep.subr.mxu0 0.0
      %604 = vmatpush2.msra.mxu0 0.0
      %605 = vmatprep.subr.mxu0 0.0
      %606 = vmatpush2.msra.mxu0 0.0
      %607 = vmatprep.subr.mxu0 0.0
      %608 = vmatpush2.msra.mxu0 0.0
      %609 = vmatprep.subr.mxu0 0.0
      %610 = vmatpush2.msra.mxu0 0.0
      %611 = vmatprep.mubr.f32.mxu0 0.0
      %612 = vmatmul.mubr.f32.gmra.mxu0 %v500
      %v613 = vpop.f32.mrf.mxu0
      %v614 = vadd.f32 0.0, %v613
      %v615 = vpop.f32.mrf.mxu0
      %616 = vmatprep.mubr.f32.mxu0 0.0
      %617 = vmatmul.mubr.f32.gmra.mxu0 %v503
      %v618 = vpop.f32.mrf.mxu0
      %v619 = vadd.f32 0.0, %v618
      %v620 = vpop.f32.mrf.mxu0
      %621 = vmatprep.mubr.f32.mxu0 0.0
      %622 = vmatmul.mubr.f32.gmra.mxu0 %v506
      %v623 = vpop.f32.mrf.mxu0
      %v624 = vadd.f32 0.0, %v623
      %v625 = vpop.f32.mrf.mxu0
      %626 = vmatprep.mubr.f32.mxu0 0.0
      %627 = vmatmul.mubr.f32.gmra.mxu0 %v509
      %v628 = vpop.f32.mrf.mxu0
      %v629 = vadd.f32 0.0, %v628
      %v630 = vpop.f32.mrf.mxu0
      %631 = vmatprep.mubr.f32.mxu0 0.0
      %632 = vmatmul.mubr.f32.gmra.mxu0 %v512
      %v633 = vpop.f32.mrf.mxu0
      %v634 = vadd.f32 0.0, %v633
      %v635 = vpop.f32.mrf.mxu0
      %636 = vmatprep.mubr.f32.mxu0 0.0
      %637 = vmatmul.mubr.f32.gmra.mxu0 %v515
      %v638 = vpop.f32.mrf.mxu0
      %v639 = vadd.f32 0.0, %v638
      %v640 = vpop.f32.mrf.mxu0
      %641 = vmatprep.mubr.f32.mxu0 0.0
      %642 = vmatmul.mubr.f32.gmra.mxu0 %v518
      %v643 = vpop.f32.mrf.mxu0
      %v644 = vadd.f32 0.0, %v643
      %v645 = vpop.f32.mrf.mxu0
      %646 = vmatprep.mubr.f32.mxu0 0.0
      %647 = vmatmul.mubr.f32.gmra.mxu0 %v521
      %v648 = vpop.f32.mrf.mxu0
      %v649 = vadd.f32 0.0, %v648
      %v650 = vpop.f32.mrf.mxu0
      %651 = vmatprep.mubr.f32.mxu0 0.0
      %652 = vmatmul.mubr.f32.gmra.mxu0 %v524
      %v653 = vpop.f32.mrf.mxu0
      %v654 = vadd.f32 0.0, %v653
      %v655 = vpop.f32.mrf.mxu0
      %656 = vmatprep.mubr.f32.mxu0 0.0
      %657 = vmatmul.mubr.f32.gmra.mxu0 %v527
      %v658 = vpop.f32.mrf.mxu0
      %v659 = vadd.f32 0.0, %v658
      %v660 = vpop.f32.mrf.mxu0
      %661 = vmatprep.mubr.f32.mxu0 0.0
      %662 = vmatmul.mubr.f32.gmra.mxu0 %v530
      %v663 = vpop.f32.mrf.mxu0
      %v664 = vadd.f32 0.0, %v663
      %v665 = vpop.f32.mrf.mxu0
      %666 = vmatprep.mubr.f32.mxu0 0.0
      %667 = vmatmul.mubr.f32.gmra.mxu0 %v533
      %v668 = vpop.f32.mrf.mxu0
      %v669 = vadd.f32 0.0, %v668
      %v670 = vpop.f32.mrf.mxu0
      %671 = vmatprep.mubr.f32.mxu0 0.0
      %672 = vmatmul.mubr.f32.gmra.mxu0 %v536
      %v673 = vpop.f32.mrf.mxu0
      %v674 = vadd.f32 0.0, %v673
      %v675 = vpop.f32.mrf.mxu0
      %676 = vmatprep.mubr.f32.mxu0 0.0
      %677 = vmatmul.mubr.f32.gmra.mxu0 %v539
      %v678 = vpop.f32.mrf.mxu0
      %v679 = vadd.f32 0.0, %v678
      %v680 = vpop.f32.mrf.mxu0
      %681 = vmatprep.mubr.f32.mxu0 0.0
      %682 = vmatmul.mubr.f32.gmra.mxu0 %v542
      %v683 = vpop.f32.mrf.mxu0
      %v684 = vadd.f32 0.0, %v683
      %v685 = vpop.f32.mrf.mxu0
      %686 = vmatprep.mubr.f32.mxu0 0.0
      %687 = vmatmul.mubr.f32.gmra.mxu0 %v545
      %v688 = vpop.f32.mrf.mxu0
      %v689 = vadd.f32 0.0, %v688
      %v690 = vpop.f32.mrf.mxu0
      %691 = vdwg.mxu0
      %v692 = vld [vmem:[#allocation2] sm:$0xff]
      %v693 = vld [vmem:[#allocation2 + $0x8] sm:$0xff]
      %v694 = vld [vmem:[#allocation2 + $0x10] sm:$0xff]
      %v695 = vld [vmem:[#allocation2 + $0x18] sm:$0xff]
      %v696 = vld [vmem:[#allocation2 + $0x20] sm:$0xff]
      %v697 = vld [vmem:[#allocation2 + $0x28] sm:$0xff]
      %v698 = vld [vmem:[#allocation2 + $0x30] sm:$0xff]
      %v699 = vld [vmem:[#allocation2 + $0x38] sm:$0xff]
      %v700 = vld [vmem:[#allocation2 + $0x40] sm:$0xff]
      %v701 = vld [vmem:[#allocation2 + $0x48] sm:$0xff]
      %v702 = vld [vmem:[#allocation2 + $0x50] sm:$0xff]
      %v703 = vld [vmem:[#allocation2 + $0x58] sm:$0xff]
      %v704 = vld [vmem:[#allocation2 + $0x60] sm:$0xff]
      %v705 = vld [vmem:[#allocation2 + $0x68] sm:$0xff]
      %v706 = vld [vmem:[#allocation2 + $0x70] sm:$0xff]
      %v707 = vld [vmem:[#allocation2 + $0x78] sm:$0xff]
      %v708 = vadd.f32 %v692, %v614
      %v709 = vadd.f32 %v693, %v619
      %v710 = vadd.f32 %v694, %v624
      %v711 = vadd.f32 %v695, %v629
      %v712 = vadd.f32 %v696, %v634
      %v713 = vadd.f32 %v697, %v639
      %v714 = vadd.f32 %v698, %v644
      %v715 = vadd.f32 %v699, %v649
      %v716 = vadd.f32 %v700, %v654
      %v717 = vadd.f32 %v701, %v659
      %v718 = vadd.f32 %v702, %v664
      %v719 = vadd.f32 %v703, %v669
      %v720 = vadd.f32 %v704, %v674
      %v721 = vadd.f32 %v705, %v679
      %v722 = vadd.f32 %v706, %v684
      %v723 = vadd.f32 %v707, %v689
      %724 = vst [vmem:[#allocation2] sm:$0xff] %v708
      %725 = vst [vmem:[#allocation2 + $0x8] sm:$0xff] %v709
      %726 = vst [vmem:[#allocation2 + $0x10] sm:$0xff] %v710
      %727 = vst [vmem:[#allocation2 + $0x18] sm:$0xff] %v711
      %728 = vst [vmem:[#allocation2 + $0x20] sm:$0xff] %v712
      %729 = vst [vmem:[#allocation2 + $0x28] sm:$0xff] %v713
      %730 = vst [vmem:[#allocation2 + $0x30] sm:$0xff] %v714
      %731 = vst [vmem:[#allocation2 + $0x38] sm:$0xff] %v715
      %732 = vst [vmem:[#allocation2 + $0x40] sm:$0xff] %v716
      %733 = vst [vmem:[#allocation2 + $0x48] sm:$0xff] %v717
      %734 = vst [vmem:[#allocation2 + $0x50] sm:$0xff] %v718
      %735 = vst [vmem:[#allocation2 + $0x58] sm:$0xff] %v719
      %736 = vst [vmem:[#allocation2 + $0x60] sm:$0xff] %v720
      %737 = vst [vmem:[#allocation2 + $0x68] sm:$0xff] %v721
      %738 = vst [vmem:[#allocation2 + $0x70] sm:$0xff] %v722
      %739 = vst [vmem:[#allocation2 + $0x78] sm:$0xff] %v723
      %v740 = vld [vmem:[%s233 + $0x1] sm:$0xff]
      %v741 = vld [vmem:[%s233 + $0x9] sm:$0xff]
      %v742 = vld [vmem:[%s233 + $0x11] sm:$0xff]
      %v743 = vld [vmem:[%s233 + $0x19] sm:$0xff]
      %v744 = vld [vmem:[%s233 + $0x21] sm:$0xff]
      %v745 = vld [vmem:[%s233 + $0x29] sm:$0xff]
      %v746 = vld [vmem:[%s233 + $0x31] sm:$0xff]
      %v747 = vld [vmem:[%s233 + $0x39] sm:$0xff]
      %v748 = vld [vmem:[%s233 + $0x41] sm:$0xff]
      %v749 = vld [vmem:[%s233 + $0x49] sm:$0xff]
      %v750 = vld [vmem:[%s233 + $0x51] sm:$0xff]
      %v751 = vld [vmem:[%s233 + $0x59] sm:$0xff]
      %v752 = vld [vmem:[%s233 + $0x61] sm:$0xff]
      %v753 = vld [vmem:[%s233 + $0x69] sm:$0xff]
      %v754 = vld [vmem:[%s233 + $0x71] sm:$0xff]
      %v755 = vld [vmem:[%s233 + $0x79] sm:$0xff]
      %v756 = vld [vmem:[%s237 + $0x18] sm:$0xf]
      %vm757 = vcmask 31744
      %v759 = vsel %vm757, %v740, 0
      %v762 = vsel %vm757, %v741, 0
      %v765 = vsel %vm757, %v742, 0
      %v768 = vsel %vm757, %v743, 0
      %v771 = vsel %vm757, %v744, 0
      %v774 = vsel %vm757, %v745, 0
      %v777 = vsel %vm757, %v746, 0
      %v780 = vsel %vm757, %v747, 0
      %v783 = vsel %vm757, %v748, 0
      %v786 = vsel %vm757, %v749, 0
      %v789 = vsel %vm757, %v750, 0
      %v792 = vsel %vm757, %v751, 0
      %v795 = vsel %vm757, %v752, 0
      %v798 = vsel %vm757, %v753, 0
      %v801 = vsel %vm757, %v754, 0
      %v804 = vsel %vm757, %v755, 0
      %vm806 = vcmask 1043456
      %v808 = vsel %vm806, %v756, 0
      %810 = vmatprep.subr.mxu0 0.0
      %811 = vmatpush1.msra.mxu0 0.0
      %812 = vmatprep.subr.mxu0 0.0
      %813 = vmatpush1.msra.mxu0 0.0
      %814 = vmatprep.subr.mxu0 0.0
      %815 = vmatpush1.msra.mxu0 0.0
      %816 = vmatprep.subr.mxu0 0.0
      %817 = vmatpush1.msra.mxu0 0.0
      %818 = vmatprep.subr.mxu0 0.0
      %819 = vmatpush1.msra.mxu0 0.0
      %820 = vmatprep.subr.mxu0 0.0
      %821 = vmatpush1.msra.mxu0 0.0
      %822 = vmatprep.subr.mxu0 0.0
      %823 = vmatpush1.msra.mxu0 0.0
      %824 = vmatprep.subr.mxu0 0.0
      %825 = vmatpush1.msra.mxu0 0.0
      %826 = vmatprep.subr.mxu0 0.0
      %827 = vmatpush1.msra.mxu0 0.0
      %828 = vmatprep.subr.mxu0 0.0
      %829 = vmatpush1.msra.mxu0 0.0
      %830 = vmatprep.subr.mxu0 0.0
      %831 = vmatpush1.msra.mxu0 0.0
      %832 = vmatprep.subr.mxu0 0.0
      %833 = vmatpush1.msra.mxu0 0.0
      %834 = vmatprep.subr.mxu0 0.0
      %835 = vmatpush1.msra.mxu0 0.0
      %836 = vmatprep.subr.mxu0 0.0
      %837 = vmatpush1.msra.mxu0 0.0
      %838 = vmatprep.subr.mxu0 0.0
      %839 = vmatpush1.msra.mxu0 0.0
      %840 = vmatprep.subr.mxu0 0.0
      %841 = vmatpush1.msra.mxu0 %v808
      %842 = vmatprep.subr.mxu0 0.0
      %843 = vmatpush2.msra.mxu0 0.0
      %844 = vmatprep.subr.mxu0 0.0
      %845 = vmatpush2.msra.mxu0 0.0
      %846 = vmatprep.subr.mxu0 0.0
      %847 = vmatpush2.msra.mxu0 0.0
      %848 = vmatprep.subr.mxu0 0.0
      %849 = vmatpush2.msra.mxu0 0.0
      %850 = vmatprep.subr.mxu0 0.0
      %851 = vmatpush2.msra.mxu0 0.0
      %852 = vmatprep.subr.mxu0 0.0
      %853 = vmatpush2.msra.mxu0 0.0
      %854 = vmatprep.subr.mxu0 0.0
      %855 = vmatpush2.msra.mxu0 0.0
      %856 = vmatprep.subr.mxu0 0.0
      %857 = vmatpush2.msra.mxu0 0.0
      %858 = vmatprep.subr.mxu0 0.0
      %859 = vmatpush2.msra.mxu0 0.0
      %860 = vmatprep.subr.mxu0 0.0
      %861 = vmatpush2.msra.mxu0 0.0
      %862 = vmatprep.subr.mxu0 0.0
      %863 = vmatpush2.msra.mxu0 0.0
      %864 = vmatprep.subr.mxu0 0.0
      %865 = vmatpush2.msra.mxu0 0.0
      %866 = vmatprep.subr.mxu0 0.0
      %867 = vmatpush2.msra.mxu0 0.0
      %868 = vmatprep.subr.mxu0 0.0
      %869 = vmatpush2.msra.mxu0 0.0
      %870 = vmatprep.subr.mxu0 0.0
      %871 = vmatpush2.msra.mxu0 0.0
      %872 = vmatprep.subr.mxu0 0.0
      %873 = vmatpush2.msra.mxu0 0.0
      %874 = vmatprep.mubr.f32.mxu0 0.0
      %875 = vmatmul.mubr.f32.gmra.mxu0 %v759
      %v876 = vpop.f32.mrf.mxu0
      %v877 = vadd.f32 0.0, %v876
      %v878 = vpop.f32.mrf.mxu0
      %879 = vmatprep.mubr.f32.mxu0 0.0
      %880 = vmatmul.mubr.f32.gmra.mxu0 %v762
      %v881 = vpop.f32.mrf.mxu0
      %v882 = vadd.f32 0.0, %v881
      %v883 = vpop.f32.mrf.mxu0
      %884 = vmatprep.mubr.f32.mxu0 0.0
      %885 = vmatmul.mubr.f32.gmra.mxu0 %v765
      %v886 = vpop.f32.mrf.mxu0
      %v887 = vadd.f32 0.0, %v886
      %v888 = vpop.f32.mrf.mxu0
      %889 = vmatprep.mubr.f32.mxu0 0.0
      %890 = vmatmul.mubr.f32.gmra.mxu0 %v768
      %v891 = vpop.f32.mrf.mxu0
      %v892 = vadd.f32 0.0, %v891
      %v893 = vpop.f32.mrf.mxu0
      %894 = vmatprep.mubr.f32.mxu0 0.0
      %895 = vmatmul.mubr.f32.gmra.mxu0 %v771
      %v896 = vpop.f32.mrf.mxu0
      %v897 = vadd.f32 0.0, %v896
      %v898 = vpop.f32.mrf.mxu0
      %899 = vmatprep.mubr.f32.mxu0 0.0
      %900 = vmatmul.mubr.f32.gmra.mxu0 %v774
      %v901 = vpop.f32.mrf.mxu0
      %v902 = vadd.f32 0.0, %v901
      %v903 = vpop.f32.mrf.mxu0
      %904 = vmatprep.mubr.f32.mxu0 0.0
      %905 = vmatmul.mubr.f32.gmra.mxu0 %v777
      %v906 = vpop.f32.mrf.mxu0
      %v907 = vadd.f32 0.0, %v906
      %v908 = vpop.f32.mrf.mxu0
      %909 = vmatprep.mubr.f32.mxu0 0.0
      %910 = vmatmul.mubr.f32.gmra.mxu0 %v780
      %v911 = vpop.f32.mrf.mxu0
      %v912 = vadd.f32 0.0, %v911
      %v913 = vpop.f32.mrf.mxu0
      %914 = vmatprep.mubr.f32.mxu0 0.0
      %915 = vmatmul.mubr.f32.gmra.mxu0 %v783
      %v916 = vpop.f32.mrf.mxu0
      %v917 = vadd.f32 0.0, %v916
      %v918 = vpop.f32.mrf.mxu0
      %919 = vmatprep.mubr.f32.mxu0 0.0
      %920 = vmatmul.mubr.f32.gmra.mxu0 %v786
      %v921 = vpop.f32.mrf.mxu0
      %v922 = vadd.f32 0.0, %v921
      %v923 = vpop.f32.mrf.mxu0
      %924 = vmatprep.mubr.f32.mxu0 0.0
      %925 = vmatmul.mubr.f32.gmra.mxu0 %v789
      %v926 = vpop.f32.mrf.mxu0
      %v927 = vadd.f32 0.0, %v926
      %v928 = vpop.f32.mrf.mxu0
      %929 = vmatprep.mubr.f32.mxu0 0.0
      %930 = vmatmul.mubr.f32.gmra.mxu0 %v792
      %v931 = vpop.f32.mrf.mxu0
      %v932 = vadd.f32 0.0, %v931
      %v933 = vpop.f32.mrf.mxu0
      %934 = vmatprep.mubr.f32.mxu0 0.0
      %935 = vmatmul.mubr.f32.gmra.mxu0 %v795
      %v936 = vpop.f32.mrf.mxu0
      %v937 = vadd.f32 0.0, %v936
      %v938 = vpop.f32.mrf.mxu0
      %939 = vmatprep.mubr.f32.mxu0 0.0
      %940 = vmatmul.mubr.f32.gmra.mxu0 %v798
      %v941 = vpop.f32.mrf.mxu0
      %v942 = vadd.f32 0.0, %v941
      %v943 = vpop.f32.mrf.mxu0
      %944 = vmatprep.mubr.f32.mxu0 0.0
      %945 = vmatmul.mubr.f32.gmra.mxu0 %v801
      %v946 = vpop.f32.mrf.mxu0
      %v947 = vadd.f32 0.0, %v946
      %v948 = vpop.f32.mrf.mxu0
      %949 = vmatprep.mubr.f32.mxu0 0.0
      %950 = vmatmul.mubr.f32.gmra.mxu0 %v804
      %v951 = vpop.f32.mrf.mxu0
      %v952 = vadd.f32 0.0, %v951
      %v953 = vpop.f32.mrf.mxu0
      %954 = vdwg.mxu0
      %v955 = vld [vmem:[#allocation2] sm:$0xff]
      %v956 = vld [vmem:[#allocation2 + $0x8] sm:$0xff]
      %v957 = vld [vmem:[#allocation2 + $0x10] sm:$0xff]
      %v958 = vld [vmem:[#allocation2 + $0x18] sm:$0xff]
      %v959 = vld [vmem:[#allocation2 + $0x20] sm:$0xff]
      %v960 = vld [vmem:[#allocation2 + $0x28] sm:$0xff]
      %v961 = vld [vmem:[#allocation2 + $0x30] sm:$0xff]
      %v962 = vld [vmem:[#allocation2 + $0x38] sm:$0xff]
      %v963 = vld [vmem:[#allocation2 + $0x40] sm:$0xff]
      %v964 = vld [vmem:[#allocation2 + $0x48] sm:$0xff]
      %v965 = vld [vmem:[#allocation2 + $0x50] sm:$0xff]
      %v966 = vld [vmem:[#allocation2 + $0x58] sm:$0xff]
      %v967 = vld [vmem:[#allocation2 + $0x60] sm:$0xff]
      %v968 = vld [vmem:[#allocation2 + $0x68] sm:$0xff]
      %v969 = vld [vmem:[#allocation2 + $0x70] sm:$0xff]
      %v970 = vld [vmem:[#allocation2 + $0x78] sm:$0xff]
      %v971 = vadd.f32 %v955, %v877
      %v972 = vadd.f32 %v956, %v882
      %v973 = vadd.f32 %v957, %v887
      %v974 = vadd.f32 %v958, %v892
      %v975 = vadd.f32 %v959, %v897
      %v976 = vadd.f32 %v960, %v902
      %v977 = vadd.f32 %v961, %v907
      %v978 = vadd.f32 %v962, %v912
      %v979 = vadd.f32 %v963, %v917
      %v980 = vadd.f32 %v964, %v922
      %v981 = vadd.f32 %v965, %v927
      %v982 = vadd.f32 %v966, %v932
      %v983 = vadd.f32 %v967, %v937
      %v984 = vadd.f32 %v968, %v942
      %v985 = vadd.f32 %v969, %v947
      %v986 = vadd.f32 %v970, %v952
      %987 = vst [vmem:[#allocation2] sm:$0xff] %v971
      %988 = vst [vmem:[#allocation2 + $0x8] sm:$0xff] %v972
      %989 = vst [vmem:[#allocation2 + $0x10] sm:$0xff] %v973
      %990 = vst [vmem:[#allocation2 + $0x18] sm:$0xff] %v974
      %991 = vst [vmem:[#allocation2 + $0x20] sm:$0xff] %v975
      %992 = vst [vmem:[#allocation2 + $0x28] sm:$0xff] %v976
      %993 = vst [vmem:[#allocation2 + $0x30] sm:$0xff] %v977
      %994 = vst [vmem:[#allocation2 + $0x38] sm:$0xff] %v978
      %995 = vst [vmem:[#allocation2 + $0x40] sm:$0xff] %v979
      %996 = vst [vmem:[#allocation2 + $0x48] sm:$0xff] %v980
      %997 = vst [vmem:[#allocation2 + $0x50] sm:$0xff] %v981
      %998 = vst [vmem:[#allocation2 + $0x58] sm:$0xff] %v982
      %999 = vst [vmem:[#allocation2 + $0x60] sm:$0xff] %v983
      %1000 = vst [vmem:[#allocation2 + $0x68] sm:$0xff] %v984
      %1001 = vst [vmem:[#allocation2 + $0x70] sm:$0xff] %v985
      %1002 = vst [vmem:[#allocation2 + $0x78] sm:$0xff] %v986
      %v1003 = vld [vmem:[%s233 + $0x1] sm:$0xff]
      %v1004 = vld [vmem:[%s233 + $0x9] sm:$0xff]
      %v1005 = vld [vmem:[%s233 + $0x11] sm:$0xff]
      %v1006 = vld [vmem:[%s233 + $0x19] sm:$0xff]
      %v1007 = vld [vmem:[%s233 + $0x21] sm:$0xff]
      %v1008 = vld [vmem:[%s233 + $0x29] sm:$0xff]
      %v1009 = vld [vmem:[%s233 + $0x31] sm:$0xff]
      %v1010 = vld [vmem:[%s233 + $0x39] sm:$0xff]
      %v1011 = vld [vmem:[%s233 + $0x41] sm:$0xff]
      %v1012 = vld [vmem:[%s233 + $0x49] sm:$0xff]
      %v1013 = vld [vmem:[%s233 + $0x51] sm:$0xff]
      %v1014 = vld [vmem:[%s233 + $0x59] sm:$0xff]
      %v1015 = vld [vmem:[%s233 + $0x61] sm:$0xff]
      %v1016 = vld [vmem:[%s233 + $0x69] sm:$0xff]
      %v1017 = vld [vmem:[%s233 + $0x71] sm:$0xff]
      %v1018 = vld [vmem:[%s233 + $0x79] sm:$0xff]
      %v1019 = vld [vmem:[%s237 + $0x1c] sm:$0xf]
      %1036 = vrot.lane.b32.xlu0 %v1003, 120
      %v1037 = vpop.permute.xlu0 %1036
      %1038 = vrot.lane.b32.xlu0 %v1004, 120
      %v1039 = vpop.permute.xlu0 %1038
      %1040 = vrot.lane.b32.xlu0 %v1005, 120
      %v1041 = vpop.permute.xlu0 %1040
      %1042 = vrot.lane.b32.xlu0 %v1006, 120
      %v1043 = vpop.permute.xlu0 %1042
      %1044 = vrot.lane.b32.xlu0 %v1007, 120
      %v1045 = vpop.permute.xlu0 %1044
      %1046 = vrot.lane.b32.xlu0 %v1008, 120
      %v1047 = vpop.permute.xlu0 %1046
      %1048 = vrot.lane.b32.xlu0 %v1009, 120
      %v1049 = vpop.permute.xlu0 %1048
      %1050 = vrot.lane.b32.xlu0 %v1010, 120
      %v1051 = vpop.permute.xlu0 %1050
      %1052 = vrot.lane.b32.xlu0 %v1011, 120
      %v1053 = vpop.permute.xlu0 %1052
      %1054 = vrot.lane.b32.xlu0 %v1012, 120
      %v1055 = vpop.permute.xlu0 %1054
      %1056 = vrot.lane.b32.xlu0 %v1013, 120
      %v1057 = vpop.permute.xlu0 %1056
      %1058 = vrot.lane.b32.xlu0 %v1014, 120
      %v1059 = vpop.permute.xlu0 %1058
      %1060 = vrot.lane.b32.xlu0 %v1015, 120
      %v1061 = vpop.permute.xlu0 %1060
      %1062 = vrot.lane.b32.xlu0 %v1016, 120
      %v1063 = vpop.permute.xlu0 %1062
      %1064 = vrot.lane.b32.xlu0 %v1017, 120
      %v1065 = vpop.permute.xlu0 %1064
      %1066 = vrot.lane.b32.xlu0 %v1018, 120
      %v1067 = vpop.permute.xlu0 %1066
      %v1068 = vsel %vm757, %v1037, 0
      %v1070 = vsel %vm757, %v1039, 0
      %v1072 = vsel %vm757, %v1041, 0
      %v1074 = vsel %vm757, %v1043, 0
      %v1076 = vsel %vm757, %v1045, 0
      %v1078 = vsel %vm757, %v1047, 0
      %v1080 = vsel %vm757, %v1049, 0
      %v1082 = vsel %vm757, %v1051, 0
      %v1084 = vsel %vm757, %v1053, 0
      %v1086 = vsel %vm757, %v1055, 0
      %v1088 = vsel %vm757, %v1057, 0
      %v1090 = vsel %vm757, %v1059, 0
      %v1092 = vsel %vm757, %v1061, 0
      %v1094 = vsel %vm757, %v1063, 0
      %v1096 = vsel %vm757, %v1065, 0
      %v1098 = vsel %vm757, %v1067, 0
      %v1101 = vsel %vm806, %v1019, 0
      %1103 = vmatprep.subr.mxu0 0.0
      %1104 = vmatpush1.msra.mxu0 0.0
      %1105 = vmatprep.subr.mxu0 0.0
      %1106 = vmatpush1.msra.mxu0 0.0
      %1107 = vmatprep.subr.mxu0 0.0
      %1108 = vmatpush1.msra.mxu0 0.0
      %1109 = vmatprep.subr.mxu0 0.0
      %1110 = vmatpush1.msra.mxu0 0.0
      %1111 = vmatprep.subr.mxu0 0.0
      %1112 = vmatpush1.msra.mxu0 0.0
      %1113 = vmatprep.subr.mxu0 0.0
      %1114 = vmatpush1.msra.mxu0 0.0
      %1115 = vmatprep.subr.mxu0 0.0
      %1116 = vmatpush1.msra.mxu0 0.0
      %1117 = vmatprep.subr.mxu0 0.0
      %1118 = vmatpush1.msra.mxu0 0.0
      %1119 = vmatprep.subr.mxu0 0.0
      %1120 = vmatpush1.msra.mxu0 0.0
      %1121 = vmatprep.subr.mxu0 0.0
      %1122 = vmatpush1.msra.mxu0 0.0
      %1123 = vmatprep.subr.mxu0 0.0
      %1124 = vmatpush1.msra.mxu0 0.0
      %1125 = vmatprep.subr.mxu0 0.0
      %1126 = vmatpush1.msra.mxu0 0.0
      %1127 = vmatprep.subr.mxu0 0.0
      %1128 = vmatpush1.msra.mxu0 0.0
      %1129 = vmatprep.subr.mxu0 0.0
      %1130 = vmatpush1.msra.mxu0 0.0
      %1131 = vmatprep.subr.mxu0 0.0
      %1132 = vmatpush1.msra.mxu0 0.0
      %1133 = vmatprep.subr.mxu0 0.0
      %1134 = vmatpush1.msra.mxu0 %v1101
      %1135 = vmatprep.subr.mxu0 0.0
      %1136 = vmatpush2.msra.mxu0 0.0
      %1137 = vmatprep.subr.mxu0 0.0
      %1138 = vmatpush2.msra.mxu0 0.0
      %1139 = vmatprep.subr.mxu0 0.0
      %1140 = vmatpush2.msra.mxu0 0.0
      %1141 = vmatprep.subr.mxu0 0.0
      %1142 = vmatpush2.msra.mxu0 0.0
      %1143 = vmatprep.subr.mxu0 0.0
      %1144 = vmatpush2.msra.mxu0 0.0
      %1145 = vmatprep.subr.mxu0 0.0
      %1146 = vmatpush2.msra.mxu0 0.0
      %1147 = vmatprep.subr.mxu0 0.0
      %1148 = vmatpush2.msra.mxu0 0.0
      %1149 = vmatprep.subr.mxu0 0.0
      %1150 = vmatpush2.msra.mxu0 0.0
      %1151 = vmatprep.subr.mxu0 0.0
      %1152 = vmatpush2.msra.mxu0 0.0
      %1153 = vmatprep.subr.mxu0 0.0
      %1154 = vmatpush2.msra.mxu0 0.0
      %1155 = vmatprep.subr.mxu0 0.0
      %1156 = vmatpush2.msra.mxu0 0.0
      %1157 = vmatprep.subr.mxu0 0.0
      %1158 = vmatpush2.msra.mxu0 0.0
      %1159 = vmatprep.subr.mxu0 0.0
      %1160 = vmatpush2.msra.mxu0 0.0
      %1161 = vmatprep.subr.mxu0 0.0
      %1162 = vmatpush2.msra.mxu0 0.0
      %1163 = vmatprep.subr.mxu0 0.0
      %1164 = vmatpush2.msra.mxu0 0.0
      %1165 = vmatprep.subr.mxu0 0.0
      %1166 = vmatpush2.msra.mxu0 0.0
      %1167 = vmatprep.mubr.f32.mxu0 0.0
      %1168 = vmatmul.mubr.f32.gmra.mxu0 %v1068
      %v1169 = vpop.f32.mrf.mxu0
      %v1170 = vadd.f32 0.0, %v1169
      %v1171 = vpop.f32.mrf.mxu0
      %1172 = vmatprep.mubr.f32.mxu0 0.0
      %1173 = vmatmul.mubr.f32.gmra.mxu0 %v1070
      %v1174 = vpop.f32.mrf.mxu0
      %v1175 = vadd.f32 0.0, %v1174
      %v1176 = vpop.f32.mrf.mxu0
      %1177 = vmatprep.mubr.f32.mxu0 0.0
      %1178 = vmatmul.mubr.f32.gmra.mxu0 %v1072
      %v1179 = vpop.f32.mrf.mxu0
      %v1180 = vadd.f32 0.0, %v1179
      %v1181 = vpop.f32.mrf.mxu0
      %1182 = vmatprep.mubr.f32.mxu0 0.0
      %1183 = vmatmul.mubr.f32.gmra.mxu0 %v1074
      %v1184 = vpop.f32.mrf.mxu0
      %v1185 = vadd.f32 0.0, %v1184
      %v1186 = vpop.f32.mrf.mxu0
      %1187 = vmatprep.mubr.f32.mxu0 0.0
      %1188 = vmatmul.mubr.f32.gmra.mxu0 %v1076
      %v1189 = vpop.f32.mrf.mxu0
      %v1190 = vadd.f32 0.0, %v1189
      %v1191 = vpop.f32.mrf.mxu0
      %1192 = vmatprep.mubr.f32.mxu0 0.0
      %1193 = vmatmul.mubr.f32.gmra.mxu0 %v1078
      %v1194 = vpop.f32.mrf.mxu0
      %v1195 = vadd.f32 0.0, %v1194
      %v1196 = vpop.f32.mrf.mxu0
      %1197 = vmatprep.mubr.f32.mxu0 0.0
      %1198 = vmatmul.mubr.f32.gmra.mxu0 %v1080
      %v1199 = vpop.f32.mrf.mxu0
      %v1200 = vadd.f32 0.0, %v1199
      %v1201 = vpop.f32.mrf.mxu0
      %1202 = vmatprep.mubr.f32.mxu0 0.0
      %1203 = vmatmul.mubr.f32.gmra.mxu0 %v1082
      %v1204 = vpop.f32.mrf.mxu0
      %v1205 = vadd.f32 0.0, %v1204
      %v1206 = vpop.f32.mrf.mxu0
      %1207 = vmatprep.mubr.f32.mxu0 0.0
      %1208 = vmatmul.mubr.f32.gmra.mxu0 %v1084
      %v1209 = vpop.f32.mrf.mxu0
      %v1210 = vadd.f32 0.0, %v1209
      %v1211 = vpop.f32.mrf.mxu0
      %1212 = vmatprep.mubr.f32.mxu0 0.0
      %1213 = vmatmul.mubr.f32.gmra.mxu0 %v1086
      %v1214 = vpop.f32.mrf.mxu0
      %v1215 = vadd.f32 0.0, %v1214
      %v1216 = vpop.f32.mrf.mxu0
      %1217 = vmatprep.mubr.f32.mxu0 0.0
      %1218 = vmatmul.mubr.f32.gmra.mxu0 %v1088
      %v1219 = vpop.f32.mrf.mxu0
      %v1220 = vadd.f32 0.0, %v1219
      %v1221 = vpop.f32.mrf.mxu0
      %1222 = vmatprep.mubr.f32.mxu0 0.0
      %1223 = vmatmul.mubr.f32.gmra.mxu0 %v1090
      %v1224 = vpop.f32.mrf.mxu0
      %v1225 = vadd.f32 0.0, %v1224
      %v1226 = vpop.f32.mrf.mxu0
      %1227 = vmatprep.mubr.f32.mxu0 0.0
      %1228 = vmatmul.mubr.f32.gmra.mxu0 %v1092
      %v1229 = vpop.f32.mrf.mxu0
      %v1230 = vadd.f32 0.0, %v1229
      %v1231 = vpop.f32.mrf.mxu0
      %1232 = vmatprep.mubr.f32.mxu0 0.0
      %1233 = vmatmul.mubr.f32.gmra.mxu0 %v1094
      %v1234 = vpop.f32.mrf.mxu0
      %v1235 = vadd.f32 0.0, %v1234
      %v1236 = vpop.f32.mrf.mxu0
      %1237 = vmatprep.mubr.f32.mxu0 0.0
      %1238 = vmatmul.mubr.f32.gmra.mxu0 %v1096
      %v1239 = vpop.f32.mrf.mxu0
      %v1240 = vadd.f32 0.0, %v1239
      %v1241 = vpop.f32.mrf.mxu0
      %1242 = vmatprep.mubr.f32.mxu0 0.0
      %1243 = vmatmul.mubr.f32.gmra.mxu0 %v1098
      %v1244 = vpop.f32.mrf.mxu0
      %v1245 = vadd.f32 0.0, %v1244
      %v1246 = vpop.f32.mrf.mxu0
      %1247 = vdwg.mxu0
      %v1248 = vld [vmem:[#allocation2] sm:$0xff]
      %v1249 = vld [vmem:[#allocation2 + $0x8] sm:$0xff]
      %v1250 = vld [vmem:[#allocation2 + $0x10] sm:$0xff]
      %v1251 = vld [vmem:[#allocation2 + $0x18] sm:$0xff]
      %v1252 = vld [vmem:[#allocation2 + $0x20] sm:$0xff]
      %v1253 = vld [vmem:[#allocation2 + $0x28] sm:$0xff]
      %v1254 = vld [vmem:[#allocation2 + $0x30] sm:$0xff]
      %v1255 = vld [vmem:[#allocation2 + $0x38] sm:$0xff]
      %v1256 = vld [vmem:[#allocation2 + $0x40] sm:$0xff]
      %v1257 = vld [vmem:[#allocation2 + $0x48] sm:$0xff]
      %v1258 = vld [vmem:[#allocation2 + $0x50] sm:$0xff]
      %v1259 = vld [vmem:[#allocation2 + $0x58] sm:$0xff]
      %v1260 = vld [vmem:[#allocation2 + $0x60] sm:$0xff]
      %v1261 = vld [vmem:[#allocation2 + $0x68] sm:$0xff]
      %v1262 = vld [vmem:[#allocation2 + $0x70] sm:$0xff]
      %v1263 = vld [vmem:[#allocation2 + $0x78] sm:$0xff]
      %v1264 = vadd.f32 %v1248, %v1170
      %v1265 = vadd.f32 %v1249, %v1175
      %v1266 = vadd.f32 %v1250, %v1180
      %v1267 = vadd.f32 %v1251, %v1185
      %v1268 = vadd.f32 %v1252, %v1190
      %v1269 = vadd.f32 %v1253, %v1195
      %v1270 = vadd.f32 %v1254, %v1200
      %v1271 = vadd.f32 %v1255, %v1205
      %v1272 = vadd.f32 %v1256, %v1210
      %v1273 = vadd.f32 %v1257, %v1215
      %v1274 = vadd.f32 %v1258, %v1220
      %v1275 = vadd.f32 %v1259, %v1225
      %v1276 = vadd.f32 %v1260, %v1230
      %v1277 = vadd.f32 %v1261, %v1235
      %v1278 = vadd.f32 %v1262, %v1240
      %v1279 = vadd.f32 %v1263, %v1245
      %1280 = vst [vmem:[#allocation2] sm:$0xff] %v1264
      %1281 = vst [vmem:[#allocation2 + $0x8] sm:$0xff] %v1265
      %1282 = vst [vmem:[#allocation2 + $0x10] sm:$0xff] %v1266
      %1283 = vst [vmem:[#allocation2 + $0x18] sm:$0xff] %v1267
      %1284 = vst [vmem:[#allocation2 + $0x20] sm:$0xff] %v1268
      %1285 = vst [vmem:[#allocation2 + $0x28] sm:$0xff] %v1269
      %1286 = vst [vmem:[#allocation2 + $0x30] sm:$0xff] %v1270
      %1287 = vst [vmem:[#allocation2 + $0x38] sm:$0xff] %v1271
      %1288 = vst [vmem:[#allocation2 + $0x40] sm:$0xff] %v1272
      %1289 = vst [vmem:[#allocation2 + $0x48] sm:$0xff] %v1273
      %1290 = vst [vmem:[#allocation2 + $0x50] sm:$0xff] %v1274
      %1291 = vst [vmem:[#allocation2 + $0x58] sm:$0xff] %v1275
      %1292 = vst [vmem:[#allocation2 + $0x60] sm:$0xff] %v1276
      %1293 = vst [vmem:[#allocation2 + $0x68] sm:$0xff] %v1277
      %1294 = vst [vmem:[#allocation2 + $0x70] sm:$0xff] %v1278
      %1295 = vst [vmem:[#allocation2 + $0x78] sm:$0xff] %v1279
      %v1296 = vld [vmem:[%s233 + $0x11] sm:$0xff]
      %v1297 = vld [vmem:[%s233 + $0x19] sm:$0xff]
      %v1298 = vld [vmem:[%s233 + $0x21] sm:$0xff]
      %v1299 = vld [vmem:[%s233 + $0x29] sm:$0xff]
      %v1300 = vld [vmem:[%s233 + $0x31] sm:$0xff]
      %v1301 = vld [vmem:[%s233 + $0x39] sm:$0xff]
      %v1302 = vld [vmem:[%s233 + $0x41] sm:$0xff]
      %v1303 = vld [vmem:[%s233 + $0x49] sm:$0xff]
      %v1304 = vld [vmem:[%s233 + $0x51] sm:$0xff]
      %v1305 = vld [vmem:[%s233 + $0x59] sm:$0xff]
      %v1306 = vld [vmem:[%s233 + $0x61] sm:$0xff]
      %v1307 = vld [vmem:[%s233 + $0x69] sm:$0xff]
      %v1308 = vld [vmem:[%s233 + $0x71] sm:$0xff]
      %v1309 = vld [vmem:[%s233 + $0x79] sm:$0xff]
      %v1310 = vld [vmem:[%s233 + $0x81] sm:$0xff]
      %v1311 = vld [vmem:[%s233 + $0x89] sm:$0xff]
      %v1312 = vld [vmem:[%s237 + $0x20] sm:$0xf]
      %v1314 = vsel %vm757, %v1296, 0
      %v1317 = vsel %vm757, %v1297, 0
      %v1320 = vsel %vm757, %v1298, 0
      %v1323 = vsel %vm757, %v1299, 0
      %v1326 = vsel %vm757, %v1300, 0
      %v1329 = vsel %vm757, %v1301, 0
      %v1332 = vsel %vm757, %v1302, 0
      %v1335 = vsel %vm757, %v1303, 0
      %v1338 = vsel %vm757, %v1304, 0
      %v1341 = vsel %vm757, %v1305, 0
      %v1344 = vsel %vm757, %v1306, 0
      %v1347 = vsel %vm757, %v1307, 0
      %v1350 = vsel %vm757, %v1308, 0
      %v1353 = vsel %vm757, %v1309, 0
      %v1356 = vsel %vm757, %v1310, 0
      %v1359 = vsel %vm757, %v1311, 0
      %v1362 = vsel %vm806, %v1312, 0
      %1364 = vmatprep.subr.mxu0 0.0
      %1365 = vmatpush1.msra.mxu0 0.0
      %1366 = vmatprep.subr.mxu0 0.0
      %1367 = vmatpush1.msra.mxu0 0.0
      %1368 = vmatprep.subr.mxu0 0.0
      %1369 = vmatpush1.msra.mxu0 0.0
      %1370 = vmatprep.subr.mxu0 0.0
      %1371 = vmatpush1.msra.mxu0 0.0
      %1372 = vmatprep.subr.mxu0 0.0
      %1373 = vmatpush1.msra.mxu0 0.0
      %1374 = vmatprep.subr.mxu0 0.0
      %1375 = vmatpush1.msra.mxu0 0.0
      %1376 = vmatprep.subr.mxu0 0.0
      %1377 = vmatpush1.msra.mxu0 0.0
      %1378 = vmatprep.subr.mxu0 0.0
      %1379 = vmatpush1.msra.mxu0 0.0
      %1380 = vmatprep.subr.mxu0 0.0
      %1381 = vmatpush1.msra.mxu0 0.0
      %1382 = vmatprep.subr.mxu0 0.0
      %1383 = vmatpush1.msra.mxu0 0.0
      %1384 = vmatprep.subr.mxu0 0.0
      %1385 = vmatpush1.msra.mxu0 0.0
      %1386 = vmatprep.subr.mxu0 0.0
      %1387 = vmatpush1.msra.mxu0 0.0
      %1388 = vmatprep.subr.mxu0 0.0
      %1389 = vmatpush1.msra.mxu0 0.0
      %1390 = vmatprep.subr.mxu0 0.0
      %1391 = vmatpush1.msra.mxu0 0.0
      %1392 = vmatprep.subr.mxu0 0.0
      %1393 = vmatpush1.msra.mxu0 0.0
      %1394 = vmatprep.subr.mxu0 0.0
      %1395 = vmatpush1.msra.mxu0 %v1362
      %1396 = vmatprep.subr.mxu0 0.0
      %1397 = vmatpush2.msra.mxu0 0.0
      %1398 = vmatprep.subr.mxu0 0.0
      %1399 = vmatpush2.msra.mxu0 0.0
      %1400 = vmatprep.subr.mxu0 0.0
      %1401 = vmatpush2.msra.mxu0 0.0
      %1402 = vmatprep.subr.mxu0 0.0
      %1403 = vmatpush2.msra.mxu0 0.0
      %1404 = vmatprep.subr.mxu0 0.0
      %1405 = vmatpush2.msra.mxu0 0.0
      %1406 = vmatprep.subr.mxu0 0.0
      %1407 = vmatpush2.msra.mxu0 0.0
      %1408 = vmatprep.subr.mxu0 0.0
      %1409 = vmatpush2.msra.mxu0 0.0
      %1410 = vmatprep.subr.mxu0 0.0
      %1411 = vmatpush2.msra.mxu0 0.0
      %1412 = vmatprep.subr.mxu0 0.0
      %1413 = vmatpush2.msra.mxu0 0.0
      %1414 = vmatprep.subr.mxu0 0.0
      %1415 = vmatpush2.msra.mxu0 0.0
      %1416 = vmatprep.subr.mxu0 0.0
      %1417 = vmatpush2.msra.mxu0 0.0
      %1418 = vmatprep.subr.mxu0 0.0
      %1419 = vmatpush2.msra.mxu0 0.0
      %1420 = vmatprep.subr.mxu0 0.0
      %1421 = vmatpush2.msra.mxu0 0.0
      %1422 = vmatprep.subr.mxu0 0.0
      %1423 = vmatpush2.msra.mxu0 0.0
      %1424 = vmatprep.subr.mxu0 0.0
      %1425 = vmatpush2.msra.mxu0 0.0
      %1426 = vmatprep.subr.mxu0 0.0
      %1427 = vmatpush2.msra.mxu0 0.0
      %1428 = vmatprep.mubr.f32.mxu0 0.0
      %1429 = vmatmul.mubr.f32.gmra.mxu0 %v1314
      %v1430 = vpop.f32.mrf.mxu0
      %v1431 = vadd.f32 0.0, %v1430
      %v1432 = vpop.f32.mrf.mxu0
      %1433 = vmatprep.mubr.f32.mxu0 0.0
      %1434 = vmatmul.mubr.f32.gmra.mxu0 %v1317
      %v1435 = vpop.f32.mrf.mxu0
      %v1436 = vadd.f32 0.0, %v1435
      %v1437 = vpop.f32.mrf.mxu0
      %1438 = vmatprep.mubr.f32.mxu0 0.0
      %1439 = vmatmul.mubr.f32.gmra.mxu0 %v1320
      %v1440 = vpop.f32.mrf.mxu0
      %v1441 = vadd.f32 0.0, %v1440
      %v1442 = vpop.f32.mrf.mxu0
      %1443 = vmatprep.mubr.f32.mxu0 0.0
      %1444 = vmatmul.mubr.f32.gmra.mxu0 %v1323
      %v1445 = vpop.f32.mrf.mxu0
      %v1446 = vadd.f32 0.0, %v1445
      %v1447 = vpop.f32.mrf.mxu0
      %1448 = vmatprep.mubr.f32.mxu0 0.0
      %1449 = vmatmul.mubr.f32.gmra.mxu0 %v1326
      %v1450 = vpop.f32.mrf.mxu0
      %v1451 = vadd.f32 0.0, %v1450
      %v1452 = vpop.f32.mrf.mxu0
      %1453 = vmatprep.mubr.f32.mxu0 0.0
      %1454 = vmatmul.mubr.f32.gmra.mxu0 %v1329
      %v1455 = vpop.f32.mrf.mxu0
      %v1456 = vadd.f32 0.0, %v1455
      %v1457 = vpop.f32.mrf.mxu0
      %1458 = vmatprep.mubr.f32.mxu0 0.0
      %1459 = vmatmul.mubr.f32.gmra.mxu0 %v1332
      %v1460 = vpop.f32.mrf.mxu0
      %v1461 = vadd.f32 0.0, %v1460
      %v1462 = vpop.f32.mrf.mxu0
      %1463 = vmatprep.mubr.f32.mxu0 0.0
      %1464 = vmatmul.mubr.f32.gmra.mxu0 %v1335
      %v1465 = vpop.f32.mrf.mxu0
      %v1466 = vadd.f32 0.0, %v1465
      %v1467 = vpop.f32.mrf.mxu0
      %1468 = vmatprep.mubr.f32.mxu0 0.0
      %1469 = vmatmul.mubr.f32.gmra.mxu0 %v1338
      %v1470 = vpop.f32.mrf.mxu0
      %v1471 = vadd.f32 0.0, %v1470
      %v1472 = vpop.f32.mrf.mxu0
      %1473 = vmatprep.mubr.f32.mxu0 0.0
      %1474 = vmatmul.mubr.f32.gmra.mxu0 %v1341
      %v1475 = vpop.f32.mrf.mxu0
      %v1476 = vadd.f32 0.0, %v1475
      %v1477 = vpop.f32.mrf.mxu0
      %1478 = vmatprep.mubr.f32.mxu0 0.0
      %1479 = vmatmul.mubr.f32.gmra.mxu0 %v1344
      %v1480 = vpop.f32.mrf.mxu0
      %v1481 = vadd.f32 0.0, %v1480
      %v1482 = vpop.f32.mrf.mxu0
      %1483 = vmatprep.mubr.f32.mxu0 0.0
      %1484 = vmatmul.mubr.f32.gmra.mxu0 %v1347
      %v1485 = vpop.f32.mrf.mxu0
      %v1486 = vadd.f32 0.0, %v1485
      %v1487 = vpop.f32.mrf.mxu0
      %1488 = vmatprep.mubr.f32.mxu0 0.0
      %1489 = vmatmul.mubr.f32.gmra.mxu0 %v1350
      %v1490 = vpop.f32.mrf.mxu0
      %v1491 = vadd.f32 0.0, %v1490
      %v1492 = vpop.f32.mrf.mxu0
      %1493 = vmatprep.mubr.f32.mxu0 0.0
      %1494 = vmatmul.mubr.f32.gmra.mxu0 %v1353
      %v1495 = vpop.f32.mrf.mxu0
      %v1496 = vadd.f32 0.0, %v1495
      %v1497 = vpop.f32.mrf.mxu0
      %1498 = vmatprep.mubr.f32.mxu0 0.0
      %1499 = vmatmul.mubr.f32.gmra.mxu0 %v1356
      %v1500 = vpop.f32.mrf.mxu0
      %v1501 = vadd.f32 0.0, %v1500
      %v1502 = vpop.f32.mrf.mxu0
      %1503 = vmatprep.mubr.f32.mxu0 0.0
      %1504 = vmatmul.mubr.f32.gmra.mxu0 %v1359
      %v1505 = vpop.f32.mrf.mxu0
      %v1506 = vadd.f32 0.0, %v1505
      %v1507 = vpop.f32.mrf.mxu0
      %1508 = vdwg.mxu0
      %v1509 = vld [vmem:[#allocation2] sm:$0xff]
      %v1510 = vld [vmem:[#allocation2 + $0x8] sm:$0xff]
      %v1511 = vld [vmem:[#allocation2 + $0x10] sm:$0xff]
      %v1512 = vld [vmem:[#allocation2 + $0x18] sm:$0xff]
      %v1513 = vld [vmem:[#allocation2 + $0x20] sm:$0xff]
      %v1514 = vld [vmem:[#allocation2 + $0x28] sm:$0xff]
      %v1515 = vld [vmem:[#allocation2 + $0x30] sm:$0xff]
      %v1516 = vld [vmem:[#allocation2 + $0x38] sm:$0xff]
      %v1517 = vld [vmem:[#allocation2 + $0x40] sm:$0xff]
      %v1518 = vld [vmem:[#allocation2 + $0x48] sm:$0xff]
      %v1519 = vld [vmem:[#allocation2 + $0x50] sm:$0xff]
      %v1520 = vld [vmem:[#allocation2 + $0x58] sm:$0xff]
      %v1521 = vld [vmem:[#allocation2 + $0x60] sm:$0xff]
      %v1522 = vld [vmem:[#allocation2 + $0x68] sm:$0xff]
      %v1523 = vld [vmem:[#allocation2 + $0x70] sm:$0xff]
      %v1524 = vld [vmem:[#allocation2 + $0x78] sm:$0xff]
      %v1525 = vadd.f32 %v1509, %v1431
      %v1526 = vadd.f32 %v1510, %v1436
      %v1527 = vadd.f32 %v1511, %v1441
      %v1528 = vadd.f32 %v1512, %v1446
      %v1529 = vadd.f32 %v1513, %v1451
      %v1530 = vadd.f32 %v1514, %v1456
      %v1531 = vadd.f32 %v1515, %v1461
      %v1532 = vadd.f32 %v1516, %v1466
      %v1533 = vadd.f32 %v1517, %v1471
      %v1534 = vadd.f32 %v1518, %v1476
      %v1535 = vadd.f32 %v1519, %v1481
      %v1536 = vadd.f32 %v1520, %v1486
      %v1537 = vadd.f32 %v1521, %v1491
      %v1538 = vadd.f32 %v1522, %v1496
      %v1539 = vadd.f32 %v1523, %v1501
      %v1540 = vadd.f32 %v1524, %v1506
      %1541 = vst [vmem:[#allocation2] sm:$0xff] %v1525
      %1542 = vst [vmem:[#allocation2 + $0x8] sm:$0xff] %v1526
      %1543 = vst [vmem:[#allocation2 + $0x10] sm:$0xff] %v1527
      %1544 = vst [vmem:[#allocation2 + $0x18] sm:$0xff] %v1528
      %1545 = vst [vmem:[#allocation2 + $0x20] sm:$0xff] %v1529
      %1546 = vst [vmem:[#allocation2 + $0x28] sm:$0xff] %v1530
      %1547 = vst [vmem:[#allocation2 + $0x30] sm:$0xff] %v1531
      %1548 = vst [vmem:[#allocation2 + $0x38] sm:$0xff] %v1532
      %1549 = vst [vmem:[#allocation2 + $0x40] sm:$0xff] %v1533
      %1550 = vst [vmem:[#allocation2 + $0x48] sm:$0xff] %v1534
      %1551 = vst [vmem:[#allocation2 + $0x50] sm:$0xff] %v1535
      %1552 = vst [vmem:[#allocation2 + $0x58] sm:$0xff] %v1536
      %1553 = vst [vmem:[#allocation2 + $0x60] sm:$0xff] %v1537
      %1554 = vst [vmem:[#allocation2 + $0x68] sm:$0xff] %v1538
      %1555 = vst [vmem:[#allocation2 + $0x70] sm:$0xff] %v1539
      %1556 = vst [vmem:[#allocation2 + $0x78] sm:$0xff] %v1540
      %v1557 = vld [vmem:[#allocation2] sm:$0xff]
      %v1558 = vld [vmem:[#allocation2 + $0x8] sm:$0xff]
      %v1559 = vld [vmem:[#allocation2 + $0x10] sm:$0xff]
      %v1560 = vld [vmem:[#allocation2 + $0x18] sm:$0xff]
      %v1561 = vld [vmem:[#allocation2 + $0x20] sm:$0xff]
      %v1562 = vld [vmem:[#allocation2 + $0x28] sm:$0xff]
      %v1563 = vld [vmem:[#allocation2 + $0x30] sm:$0xff]
      %v1564 = vld [vmem:[#allocation2 + $0x38] sm:$0xff]
      %v1565 = vld [vmem:[#allocation2 + $0x40] sm:$0xff]
      %v1566 = vld [vmem:[#allocation2 + $0x48] sm:$0xff]
      %v1567 = vld [vmem:[#allocation2 + $0x50] sm:$0xff]
      %v1568 = vld [vmem:[#allocation2 + $0x58] sm:$0xff]
      %v1569 = vld [vmem:[#allocation2 + $0x60] sm:$0xff]
      %v1570 = vld [vmem:[#allocation2 + $0x68] sm:$0xff]
      %v1571 = vld [vmem:[#allocation2 + $0x70] sm:$0xff]
      %v1572 = vld [vmem:[#allocation2 + $0x78] sm:$0xff]
      %v1573 = vld [vmem:[%s240] sm:$0x1]
      %v1575 = vlaneseq
      %v1576 = vshrl.u32 %v1575, 7
      %v1577 = vsub.s32 0, %v1576
      %v1578 = vrot.slane %v1573, %v1577
      %v1580 = vadd.f32 %v1557, %v1578
      %v1581 = vadd.f32 %v1558, %v1578
      %v1582 = vadd.f32 %v1559, %v1578
      %v1583 = vadd.f32 %v1560, %v1578
      %v1584 = vadd.f32 %v1561, %v1578
      %v1585 = vadd.f32 %v1562, %v1578
      %v1586 = vadd.f32 %v1563, %v1578
      %v1587 = vadd.f32 %v1564, %v1578
      %v1588 = vadd.f32 %v1565, %v1578
      %v1589 = vadd.f32 %v1566, %v1578
      %v1590 = vadd.f32 %v1567, %v1578
      %v1591 = vadd.f32 %v1568, %v1578
      %v1592 = vadd.f32 %v1569, %v1578
      %v1593 = vadd.f32 %v1570, %v1578
      %v1594 = vadd.f32 %v1571, %v1578
      %v1595 = vadd.f32 %v1572, %v1578
      %1596 = vst [vmem:[%s252] sm:$0xff] %v1580
      %1597 = vst [vmem:[%s252 + $0x8] sm:$0xff] %v1581
      %1598 = vst [vmem:[%s252 + $0x10] sm:$0xff] %v1582
      %1599 = vst [vmem:[%s252 + $0x18] sm:$0xff] %v1583
      %1600 = vst [vmem:[%s252 + $0x20] sm:$0xff] %v1584
      %1601 = vst [vmem:[%s252 + $0x28] sm:$0xff] %v1585
      %1602 = vst [vmem:[%s252 + $0x30] sm:$0xff] %v1586
      %1603 = vst [vmem:[%s252 + $0x38] sm:$0xff] %v1587
      %1604 = vst [vmem:[%s252 + $0x40] sm:$0xff] %v1588
      %1605 = vst [vmem:[%s252 + $0x48] sm:$0xff] %v1589
      %1606 = vst [vmem:[%s252 + $0x50] sm:$0xff] %v1590
      %1607 = vst [vmem:[%s252 + $0x58] sm:$0xff] %v1591
      %1608 = vst [vmem:[%s252 + $0x60] sm:$0xff] %v1592
      %1609 = vst [vmem:[%s252 + $0x68] sm:$0xff] %v1593
      %1610 = vst [vmem:[%s252 + $0x70] sm:$0xff] %v1594
      %1611 = vst [vmem:[%s252 + $0x78] sm:$0xff] %v1595
      %p1612 = scmp.lt.s32.totalorder %s20, 1
      %s1613 = scalar_select %p1612, %s20, 1
      %p1614 = scmp.lt.s32.totalorder %s21, 0
      %s1615 = scalar_select %p1614, %s21, 0
      %p1616 = scmp.lt.s32.totalorder %s19, 0
      %s1617 = scalar_select %p1616, %s19, 0
      %s1618 = smul.addr %s1615, 16
      %s1619 = sadd.s32 %s1617, %s1618
      %s1620 = smul.addr %s1613, 16
      %s1621 = sadd.s32 %s1619, %s1620
      %s1622 = smul.addr %s1621, 8
      %s1623 = scalar_lea.vmem %s3, %s1622
      // Predicated region
      $region33: #{downsample2d_with_conv.1} parent=31 // pred_check
        %p1624 = pneg %p135
      $region34: #{downsample2d_with_conv.1} parent=31 // pred_check_branch
        %1626 = sbr.rel (%p1624) target = $region36
      $region35: #{downsample2d_with_conv.1} parent=31 // pred_region
        _
      $region36: #{downsample2d_with_conv.1} parent=31 // pred_fallthru
        _
    $region32: #{downsample2d_with_conv.1} parent=5 // pred_fallthru
      _
    %p1627 = scmp.le.s32.totalorder 2, %s9
    // Predicated region
    $region37: #{downsample2d_with_conv.1} parent=5 // pred_check
      %p1628 = pneg %p1627
    $region38: #{downsample2d_with_conv.1} parent=5 // pred_check_branch
      %1630 = sbr.rel (%p1628) target = $region40
    $region39: #{downsample2d_with_conv.1} parent=5 // pred_region
      %s1631 = ssub.s32 %s9, 2
      // Predicated region
      $region41: #{downsample2d_with_conv.1} parent=39 // pred_check
        %p1632 = pneg %p141
      $region42: #{downsample2d_with_conv.1} parent=39 // pred_check_branch
        %1634 = sbr.rel (%p1632) target = $region44
      $region43: #{downsample2d_with_conv.1} parent=39 // pred_region
        %p1635 = scmp.lt.s32.totalorder %s23, 1
        %s1636 = scalar_select %p1635, %s23, 1
        %p1637 = scmp.lt.s32.totalorder %s24, 0
        %s1638 = scalar_select %p1637, %s24, 0
        %p1639 = scmp.lt.s32.totalorder %s22, 0
        %s1640 = scalar_select %p1639, %s22, 0
        %s1641 = smul.addr %s1638, 16
        %s1642 = sadd.s32 %s1640, %s1641
        %s1643 = smul.addr %s1636, 16
        %s1644 = sadd.s32 %s1642, %s1643
        %s1645 = smul.addr %s1644, 8
        %s1646 = scalar_lea.vmem %s3, %s1645
      $region44: #{downsample2d_with_conv.1} parent=39 // pred_fallthru
        _
    $region40: #{downsample2d_with_conv.1} parent=5 // pred_fallthru
      _
  $region6: #{downsample2d_with_conv.1} parent=0 // loop_footer
    %s13 = sadd.s32 1, %s9
  $region7: #{downsample2d_with_conv.1} parent=0 // loop_footer_branch
    %8 = sbr.rel target = $region3
  $region8: #{downsample2d_with_conv.1} parent=0 // loop_exit
    _

</llo_original>
